<compile_context>
chip_gen: v5e
topology: v5e:2x2
jax: 0.10.0
libtpu: 0.0.40
codegen_flags: <defaults>
</compile_context>

<pallas_src>
import jax
import jax.numpy as jnp
from jax.experimental import pallas as pl
from jax.experimental.pallas import tpu as pltpu


def gru_fused_kernel(ids_ref, fused_ref, whh_ref, bhn_ref, h0_ref, out_ref):
    """Fused embedding-gather + full GRU recurrence, batch-on-lanes layout.

    ids_ref:   (T, 1, B) int32  token ids
    fused_ref: (3H, Vp)  f32    (emb @ W_ih^T + b_ih + [b_hr|b_hz|0])^T, vocab
                                zero-padded to Vp (multiple of 8)
    whh_ref:   (3H, H)   f32    PyTorch W_hh, gates [r|z|n] stacked on rows
    bhn_ref:   (H, 1)    f32    hidden-side bias of the n gate
    h0_ref:    (H, B)    f32    initial hidden state (transposed)
    out_ref:   (T, H, B) f32    per-step hidden states (transposed outputs)
    """
    T = ids_ref.shape[0]
    B = ids_ref.shape[2]
    H = whh_ref.shape[1]
    Vp = fused_ref.shape[1]

    # Loop-invariant operands: load / broadcast ONCE (JAX does not CSE
    # broadcast_in_dim, so hoist out of the loop body).
    fused_t = fused_ref[...]                                  # (3H, Vp)
    whh = whh_ref[...]                                        # (3H, H)
    bhn = jnp.broadcast_to(bhn_ref[...], (H, B))              # (H, B)
    row_iota = jax.lax.broadcasted_iota(jnp.int32, (Vp, B), 0)  # (Vp, B)

    def step(t, h):
        ids = ids_ref[t]                                      # (1, B) int32
        # One-hot gather of the fused table via a tiny MXU matmul:
        #   gi = fused^T(3H, Vp) @ one_hot(Vp, B) -> (3H, B)
        one_hot = (row_iota == ids).astype(jnp.float32)       # (Vp, B)
        gi = jnp.dot(fused_t, one_hot, preferred_element_type=jnp.float32)
        # Single fused hidden-side matmul for all three gates.
        gh = jnp.dot(whh, h, preferred_element_type=jnp.float32)  # (3H, B)
        # Gate slices are along the leading axis (sublane-aligned, H=32):
        # no mid-vreg lane cuts.
        r = jax.nn.sigmoid(gi[0 * H:1 * H, :] + gh[0 * H:1 * H, :])
        z = jax.nn.sigmoid(gi[1 * H:2 * H, :] + gh[1 * H:2 * H, :])
        n = jnp.tanh(gi[2 * H:3 * H, :] + r * (gh[2 * H:3 * H, :] + bhn))
        h_new = n + z * (h - n)                               # == (1-z)*n + z*h
        out_ref[t] = h_new                                    # lane-dense store
        return h_new

    # Short static trip-count: unroll so the LLO scheduler sees the whole body.
    jax.lax.fori_loop(0, T, step, h0_ref[...], unroll=True)


@jax.jit
def encoder_rnn_forward(input_ids, hidden, emb_table, w_ih, w_hh, b_ih, b_hh):
    """Mirrors EncoderRNN.forward(input, hidden) for n_layers=1.

    input_ids: (T, B) int32 token indices
    hidden:    (1, B, H) float32
    Returns (output, hidden): output (T, B, H), hidden (1, B, H).
    """
    _, B, H = hidden.shape
    T = input_ids.shape[0]
    vocab = emb_table.shape[0]
    Vp = ((vocab + 7) // 8) * 8  # pad vocab dim to a sublane multiple

    # Fused (vocab, 3H) table: embedding lookup + input projection + b_ih,
    # with b_hh[r], b_hh[z] folded in (plain adds outside any product).
    # b_hh[n] must stay inside r*(...), so it is handled in-kernel.
    bias_fold = jnp.concatenate(
        [b_hh[:H], b_hh[H:2 * H], jnp.zeros((H,), jnp.float32)])
    fused = (jnp.dot(emb_table, w_ih.T, preferred_element_type=jnp.float32)
             + b_ih[None, :] + bias_fold[None, :])            # (vocab, 3H)
    fused_t = jnp.zeros((3 * H, Vp), jnp.float32).at[:, :vocab].set(fused.T)

    out_thb = pl.pallas_call(
        gru_fused_kernel,
        out_shape=jax.ShapeDtypeStruct((T, H, B), jnp.float32),
        in_specs=[
            pl.BlockSpec(memory_space=pltpu.MemorySpace.VMEM),  # ids
            pl.BlockSpec(memory_space=pltpu.MemorySpace.VMEM),  # fused table^T
            pl.BlockSpec(memory_space=pltpu.MemorySpace.VMEM),  # W_hh
            pl.BlockSpec(memory_space=pltpu.MemorySpace.VMEM),  # b_hn
            pl.BlockSpec(memory_space=pltpu.MemorySpace.VMEM),  # h0^T
        ],
        out_specs=pl.BlockSpec(memory_space=pltpu.MemorySpace.VMEM),
    )(
        input_ids.reshape(T, 1, B).astype(jnp.int32),
        fused_t,
        w_hh,
        b_hh[2 * H:3 * H].reshape(H, 1),
        hidden[0].T,
    )

    # Back to the module's (T, B, H) layout; single cheap transpose in XLA.
    output = jnp.transpose(out_thb, (0, 2, 1))
    # Single-layer unidirectional GRU: final hidden state == last output step.
    return output, output[-1:]


def gru_reference(input_ids, hidden, emb_table, w_ih, w_hh, b_ih, b_hh):
    """Pure-JAX reference (lax.scan) matching PyTorch GRU semantics."""
    _, B, H = hidden.shape
    embedded = jnp.take(emb_table, input_ids.reshape(-1), axis=0).reshape(-1, B, H)

    def step(h, x):
        gi = x @ w_ih.T + b_ih
        gh = h @ w_hh.T + b_hh
        r = jax.nn.sigmoid(gi[:, :H] + gh[:, :H])
        z = jax.nn.sigmoid(gi[:, H:2 * H] + gh[:, H:2 * H])
        n = jnp.tanh(gi[:, 2 * H:] + r * gh[:, 2 * H:])
        h_new = (1.0 - z) * n + z * h
        return h_new, h_new

    hN, out = jax.lax.scan(step, hidden[0], embedded)
    return out, hN[None]


def init_params(key, input_size, hidden_size):
    """PyTorch-shaped parameters.

    nn.Embedding(input_size, H): (input_size, H), N(0, 1)
    nn.GRU(H, H): W_ih (3H, H), W_hh (3H, H), b_ih (3H,), b_hh (3H,),
    U(-1/sqrt(H), 1/sqrt(H)); gate stacking order is PyTorch's (reset, update, new).
    """
    H = hidden_size
    bound = 1.0 / (H ** 0.5)
    k0, k1, k2, k3, k4 = jax.random.split(key, 5)
    emb_table = jax.random.normal(k0, (input_size, H), jnp.float32)
    w_ih = jax.random.uniform(k1, (3 * H, H), jnp.float32, -bound, bound)
    w_hh = jax.random.uniform(k2, (3 * H, H), jnp.float32, -bound, bound)
    b_ih = jax.random.uniform(k3, (3 * H,), jnp.float32, -bound, bound)
    b_hh = jax.random.uniform(k4, (3 * H,), jnp.float32, -bound, bound)
    return emb_table, w_ih, w_hh, b_ih, b_hh


if __name__ == "__main__":
    # Shapes from the module: vocab=10, hidden=32, batch=128; short seq of 8.
    input_size = 10
    hidden_size = 32
    batch_size = 128
    seq_len = 8
    n_layers = 1  # the module's forward only shape-checks for n_layers=1

    key = jax.random.PRNGKey(0)
    k_tok, k_par = jax.random.split(key)

    emb_table, w_ih, w_hh, b_ih, b_hh = init_params(k_par, input_size, hidden_size)
    input_ids = jax.random.randint(k_tok, (seq_len, batch_size), 0, input_size,
                                   dtype=jnp.int32)
    hidden0 = jnp.zeros((n_layers, batch_size, hidden_size), jnp.float32)  # initHidden()

    output, hidden = encoder_rnn_forward(
        input_ids, hidden0, emb_table, w_ih, w_hh, b_ih, b_hh)
    jax.block_until_ready((output, hidden))

    assert output.shape == (seq_len, batch_size, hidden_size)
    assert hidden.shape == (n_layers, batch_size, hidden_size)

    # Correctness vs. a pure-JAX scan reference.  Tolerance absorbs MXU-vs-XLA
    # f32 matmul precision-regime differences while catching any structural /
    # gate-order / layout error.
    ref_out, ref_hidden = gru_reference(
        input_ids, hidden0, emb_table, w_ih, w_hh, b_ih, b_hh)
    assert jnp.allclose(output, ref_out, atol=1e-2, rtol=1e-2)
    assert jnp.allclose(hidden, ref_hidden, atol=1e-2, rtol=1e-2)
    # GRU invariant: last output step equals the returned hidden state.
    assert jnp.allclose(output[-1], hidden[0])

    print("KERNEL_OK")
</pallas_src>

<mosaic_0001>
module attributes {stable_mosaic.version = 11 : i64} {
  func.func @gru_fused_kernel(%arg0: memref<8x1x128xi32, #tpu.memory_space<vmem>>, %arg1: memref<96x16xf32, #tpu.memory_space<vmem>>, %arg2: memref<96x32xf32, #tpu.memory_space<vmem>>, %arg3: memref<32x1xf32, #tpu.memory_space<vmem>>, %arg4: memref<32x128xf32, #tpu.memory_space<vmem>>, %arg5: memref<8x32x128xf32, #tpu.memory_space<vmem>>) attributes {dimension_semantics = [], scalar_prefetch = 0 : i64, scratch_operands = 0 : i64, tpu.core_type = #tpu.core_type<tc>} {
    %c0 = arith.constant 0 : index
    %c0_0 = arith.constant 0 : index
    %0 = vector.load %arg1[%c0, %c0_0] : memref<96x16xf32, #tpu.memory_space<vmem>>, vector<96x16xf32>
    %c0_1 = arith.constant 0 : index
    %c0_2 = arith.constant 0 : index
    %1 = vector.load %arg2[%c0_1, %c0_2] : memref<96x32xf32, #tpu.memory_space<vmem>>, vector<96x32xf32>
    %c0_3 = arith.constant 0 : index
    %c0_4 = arith.constant 0 : index
    %2 = vector.load %arg3[%c0_3, %c0_4] : memref<32x1xf32, #tpu.memory_space<vmem>>, vector<32x1xf32>
    %3 = vector.shape_cast %2 : vector<32x1xf32> to vector<32x1xf32>
    %4 = vector.broadcast %3 : vector<32x1xf32> to vector<32x128xf32>
    %5 = tpu.iota {dimensions = array<i32: 0>} : vector<16x128xi32>
    %c0_5 = arith.constant 0 : index
    %c0_6 = arith.constant 0 : index
    %6 = vector.load %arg4[%c0_5, %c0_6] : memref<32x128xf32, #tpu.memory_space<vmem>>, vector<32x128xf32>
    %c0_i32 = arith.constant 0 : i32
    %7 = arith.index_cast %c0_i32 : i32 to index
    %c0_7 = arith.constant 0 : index
    %c0_8 = arith.constant 0 : index
    %8 = vector.load %arg0[%7, %c0_7, %c0_8] : memref<8x1x128xi32, #tpu.memory_space<vmem>>, vector<1x1x128xi32>
    %9 = vector.shape_cast %8 : vector<1x1x128xi32> to vector<1x128xi32>
    %10 = vector.broadcast %9 : vector<1x128xi32> to vector<16x128xi32>
    %11 = arith.cmpi eq, %5, %10 : vector<16x128xi32>
    %12 = arith.extui %11 : vector<16x128xi1> to vector<16x128xi32>
    %13 = arith.sitofp %12 : vector<16x128xi32> to vector<16x128xf32>
    %cst = arith.constant dense<0.000000e+00> : vector<96x128xf32>
    %14 = tpu.matmul %0, %13, %cst {dimension_numbers = #tpu.dot_dimension_numbers<[1], [0], [0], [1], [0, 0, 1, 1], [], []>} : vector<96x16xf32>, vector<16x128xf32>, vector<96x128xf32> -> vector<96x128xf32>
    %cst_9 = arith.constant dense<0.000000e+00> : vector<96x128xf32>
    %15 = tpu.matmul %1, %6, %cst_9 {dimension_numbers = #tpu.dot_dimension_numbers<[1], [0], [0], [1], [0, 0, 1, 1], [], []>} : vector<96x32xf32>, vector<32x128xf32>, vector<96x128xf32> -> vector<96x128xf32>
    %16 = vector.extract_strided_slice %14 {offsets = [0, 0], sizes = [32, 128], strides = [1, 1]} : vector<96x128xf32> to vector<32x128xf32>
    %17 = vector.extract_strided_slice %15 {offsets = [0, 0], sizes = [32, 128], strides = [1, 1]} : vector<96x128xf32> to vector<32x128xf32>
    %18 = arith.addf %16, %17 : vector<32x128xf32>
    %19 = arith.negf %18 : vector<32x128xf32>
    %20 = math.exp %19 : vector<32x128xf32>
    %cst_10 = arith.constant 1.000000e+00 : f32
    %21 = vector.broadcast %cst_10 : f32 to vector<32x128xf32>
    %22 = arith.addf %21, %20 : vector<32x128xf32>
    %23 = arith.divf %21, %22 : vector<32x128xf32>
    %24 = vector.extract_strided_slice %14 {offsets = [32, 0], sizes = [32, 128], strides = [1, 1]} : vector<96x128xf32> to vector<32x128xf32>
    %25 = vector.extract_strided_slice %15 {offsets = [32, 0], sizes = [32, 128], strides = [1, 1]} : vector<96x128xf32> to vector<32x128xf32>
    %26 = arith.addf %24, %25 : vector<32x128xf32>
    %27 = arith.negf %26 : vector<32x128xf32>
    %28 = math.exp %27 : vector<32x128xf32>
    %cst_11 = arith.constant 1.000000e+00 : f32
    %29 = vector.broadcast %cst_11 : f32 to vector<32x128xf32>
    %30 = arith.addf %29, %28 : vector<32x128xf32>
    %31 = arith.divf %29, %30 : vector<32x128xf32>
    %32 = vector.extract_strided_slice %14 {offsets = [64, 0], sizes = [32, 128], strides = [1, 1]} : vector<96x128xf32> to vector<32x128xf32>
    %33 = vector.extract_strided_slice %15 {offsets = [64, 0], sizes = [32, 128], strides = [1, 1]} : vector<96x128xf32> to vector<32x128xf32>
    %34 = arith.addf %33, %4 : vector<32x128xf32>
    %35 = arith.mulf %23, %34 : vector<32x128xf32>
    %36 = arith.addf %32, %35 : vector<32x128xf32>
    %37 = math.tanh %36 : vector<32x128xf32>
    %38 = arith.subf %6, %37 : vector<32x128xf32>
    %39 = arith.mulf %31, %38 : vector<32x128xf32>
    %40 = arith.addf %37, %39 : vector<32x128xf32>
    %41 = arith.index_cast %c0_i32 : i32 to index
    %c0_12 = arith.constant 0 : index
    %c0_13 = arith.constant 0 : index
    %42 = vector.load %arg5[%41, %c0_12, %c0_13] : memref<8x32x128xf32, #tpu.memory_space<vmem>>, vector<1x32x128xf32>
    %43 = vector.shape_cast %42 : vector<1x32x128xf32> to vector<32x128xf32>
    %44 = vector.shape_cast %40 : vector<32x128xf32> to vector<1x32x128xf32>
    tpu.vector_store %arg5[%41, %c0_12, %c0_13], %44 {strides = array<i32>} : memref<8x32x128xf32, #tpu.memory_space<vmem>>, vector<1x32x128xf32>,
    %c1_i32 = arith.constant 1 : i32
    %45 = arith.index_cast %c1_i32 : i32 to index
    %c0_14 = arith.constant 0 : index
    %c0_15 = arith.constant 0 : index
    %46 = vector.load %arg0[%45, %c0_14, %c0_15] : memref<8x1x128xi32, #tpu.memory_space<vmem>>, vector<1x1x128xi32>
    %47 = vector.shape_cast %46 : vector<1x1x128xi32> to vector<1x128xi32>
    %48 = vector.broadcast %47 : vector<1x128xi32> to vector<16x128xi32>
    %49 = arith.cmpi eq, %5, %48 : vector<16x128xi32>
    %50 = arith.extui %49 : vector<16x128xi1> to vector<16x128xi32>
    %51 = arith.sitofp %50 : vector<16x128xi32> to vector<16x128xf32>
    %cst_16 = arith.constant dense<0.000000e+00> : vector<96x128xf32>
    %52 = tpu.matmul %0, %51, %cst_16 {dimension_numbers = #tpu.dot_dimension_numbers<[1], [0], [0], [1], [0, 0, 1, 1], [], []>} : vector<96x16xf32>, vector<16x128xf32>, vector<96x128xf32> -> vector<96x128xf32>
    %cst_17 = arith.constant dense<0.000000e+00> : vector<96x128xf32>
    %53 = tpu.matmul %1, %40, %cst_17 {dimension_numbers = #tpu.dot_dimension_numbers<[1], [0], [0], [1], [0, 0, 1, 1], [], []>} : vector<96x32xf32>, vector<32x128xf32>, vector<96x128xf32> -> vector<96x128xf32>
    %54 = vector.extract_strided_slice %52 {offsets = [0, 0], sizes = [32, 128], strides = [1, 1]} : vector<96x128xf32> to vector<32x128xf32>
    %55 = vector.extract_strided_slice %53 {offsets = [0, 0], sizes = [32, 128], strides = [1, 1]} : vector<96x128xf32> to vector<32x128xf32>
    %56 = arith.addf %54, %55 : vector<32x128xf32>
    %57 = arith.negf %56 : vector<32x128xf32>
    %58 = math.exp %57 : vector<32x128xf32>
    %cst_18 = arith.constant 1.000000e+00 : f32
    %59 = vector.broadcast %cst_18 : f32 to vector<32x128xf32>
    %60 = arith.addf %59, %58 : vector<32x128xf32>
    %61 = arith.divf %59, %60 : vector<32x128xf32>
    %62 = vector.extract_strided_slice %52 {offsets = [32, 0], sizes = [32, 128], strides = [1, 1]} : vector<96x128xf32> to vector<32x128xf32>
    %63 = vector.extract_strided_slice %53 {offsets = [32, 0], sizes = [32, 128], strides = [1, 1]} : vector<96x128xf32> to vector<32x128xf32>
    %64 = arith.addf %62, %63 : vector<32x128xf32>
    %65 = arith.negf %64 : vector<32x128xf32>
    %66 = math.exp %65 : vector<32x128xf32>
    %cst_19 = arith.constant 1.000000e+00 : f32
    %67 = vector.broadcast %cst_19 : f32 to vector<32x128xf32>
    %68 = arith.addf %67, %66 : vector<32x128xf32>
    %69 = arith.divf %67, %68 : vector<32x128xf32>
    %70 = vector.extract_strided_slice %52 {offsets = [64, 0], sizes = [32, 128], strides = [1, 1]} : vector<96x128xf32> to vector<32x128xf32>
    %71 = vector.extract_strided_slice %53 {offsets = [64, 0], sizes = [32, 128], strides = [1, 1]} : vector<96x128xf32> to vector<32x128xf32>
    %72 = arith.addf %71, %4 : vector<32x128xf32>
    %73 = arith.mulf %61, %72 : vector<32x128xf32>
    %74 = arith.addf %70, %73 : vector<32x128xf32>
    %75 = math.tanh %74 : vector<32x128xf32>
    %76 = arith.subf %40, %75 : vector<32x128xf32>
    %77 = arith.mulf %69, %76 : vector<32x128xf32>
    %78 = arith.addf %75, %77 : vector<32x128xf32>
    %79 = arith.index_cast %c1_i32 : i32 to index
    %c0_20 = arith.constant 0 : index
    %c0_21 = arith.constant 0 : index
    %80 = vector.load %arg5[%79, %c0_20, %c0_21] : memref<8x32x128xf32, #tpu.memory_space<vmem>>, vector<1x32x128xf32>
    %81 = vector.shape_cast %80 : vector<1x32x128xf32> to vector<32x128xf32>
    %82 = vector.shape_cast %78 : vector<32x128xf32> to vector<1x32x128xf32>
    tpu.vector_store %arg5[%79, %c0_20, %c0_21], %82 {strides = array<i32>} : memref<8x32x128xf32, #tpu.memory_space<vmem>>, vector<1x32x128xf32>,
    %c2_i32 = arith.constant 2 : i32
    %83 = arith.index_cast %c2_i32 : i32 to index
    %c0_22 = arith.constant 0 : index
    %c0_23 = arith.constant 0 : index
    %84 = vector.load %arg0[%83, %c0_22, %c0_23] : memref<8x1x128xi32, #tpu.memory_space<vmem>>, vector<1x1x128xi32>
    %85 = vector.shape_cast %84 : vector<1x1x128xi32> to vector<1x128xi32>
    %86 = vector.broadcast %85 : vector<1x128xi32> to vector<16x128xi32>
    %87 = arith.cmpi eq, %5, %86 : vector<16x128xi32>
    %88 = arith.extui %87 : vector<16x128xi1> to vector<16x128xi32>
    %89 = arith.sitofp %88 : vector<16x128xi32> to vector<16x128xf32>
    %cst_24 = arith.constant dense<0.000000e+00> : vector<96x128xf32>
    %90 = tpu.matmul %0, %89, %cst_24 {dimension_numbers = #tpu.dot_dimension_numbers<[1], [0], [0], [1], [0, 0, 1, 1], [], []>} : vector<96x16xf32>, vector<16x128xf32>, vector<96x128xf32> -> vector<96x128xf32>
    %cst_25 = arith.constant dense<0.000000e+00> : vector<96x128xf32>
    %91 = tpu.matmul %1, %78, %cst_25 {dimension_numbers = #tpu.dot_dimension_numbers<[1], [0], [0], [1], [0, 0, 1, 1], [], []>} : vector<96x32xf32>, vector<32x128xf32>, vector<96x128xf32> -> vector<96x128xf32>
    %92 = vector.extract_strided_slice %90 {offsets = [0, 0], sizes = [32, 128], strides = [1, 1]} : vector<96x128xf32> to vector<32x128xf32>
    %93 = vector.extract_strided_slice %91 {offsets = [0, 0], sizes = [32, 128], strides = [1, 1]} : vector<96x128xf32> to vector<32x128xf32>
    %94 = arith.addf %92, %93 : vector<32x128xf32>
    %95 = arith.negf %94 : vector<32x128xf32>
    %96 = math.exp %95 : vector<32x128xf32>
    %cst_26 = arith.constant 1.000000e+00 : f32
    %97 = vector.broadcast %cst_26 : f32 to vector<32x128xf32>
    %98 = arith.addf %97, %96 : vector<32x128xf32>
    %99 = arith.divf %97, %98 : vector<32x128xf32>
    %100 = vector.extract_strided_slice %90 {offsets = [32, 0], sizes = [32, 128], strides = [1, 1]} : vector<96x128xf32> to vector<32x128xf32>
    %101 = vector.extract_strided_slice %91 {offsets = [32, 0], sizes = [32, 128], strides = [1, 1]} : vector<96x128xf32> to vector<32x128xf32>
    %102 = arith.addf %100, %101 : vector<32x128xf32>
    %103 = arith.negf %102 : vector<32x128xf32>
    %104 = math.exp %103 : vector<32x128xf32>
    %cst_27 = arith.constant 1.000000e+00 : f32
    %105 = vector.broadcast %cst_27 : f32 to vector<32x128xf32>
    %106 = arith.addf %105, %104 : vector<32x128xf32>
    %107 = arith.divf %105, %106 : vector<32x128xf32>
    %108 = vector.extract_strided_slice %90 {offsets = [64, 0], sizes = [32, 128], strides = [1, 1]} : vector<96x128xf32> to vector<32x128xf32>
    %109 = vector.extract_strided_slice %91 {offsets = [64, 0], sizes = [32, 128], strides = [1, 1]} : vector<96x128xf32> to vector<32x128xf32>
    %110 = arith.addf %109, %4 : vector<32x128xf32>
    %111 = arith.mulf %99, %110 : vector<32x128xf32>
    %112 = arith.addf %108, %111 : vector<32x128xf32>
    %113 = math.tanh %112 : vector<32x128xf32>
    %114 = arith.subf %78, %113 : vector<32x128xf32>
    %115 = arith.mulf %107, %114 : vector<32x128xf32>
    %116 = arith.addf %113, %115 : vector<32x128xf32>
    %117 = arith.index_cast %c2_i32 : i32 to index
    %c0_28 = arith.constant 0 : index
    %c0_29 = arith.constant 0 : index
    %118 = vector.load %arg5[%117, %c0_28, %c0_29] : memref<8x32x128xf32, #tpu.memory_space<vmem>>, vector<1x32x128xf32>
    %119 = vector.shape_cast %118 : vector<1x32x128xf32> to vector<32x128xf32>
    %120 = vector.shape_cast %116 : vector<32x128xf32> to vector<1x32x128xf32>
    tpu.vector_store %arg5[%117, %c0_28, %c0_29], %120 {strides = array<i32>} : memref<8x32x128xf32, #tpu.memory_space<vmem>>, vector<1x32x128xf32>,
    %c3_i32 = arith.constant 3 : i32
    %121 = arith.index_cast %c3_i32 : i32 to index
    %c0_30 = arith.constant 0 : index
    %c0_31 = arith.constant 0 : index
    %122 = vector.load %arg0[%121, %c0_30, %c0_31] : memref<8x1x128xi32, #tpu.memory_space<vmem>>, vector<1x1x128xi32>
    %123 = vector.shape_cast %122 : vector<1x1x128xi32> to vector<1x128xi32>
    %124 = vector.broadcast %123 : vector<1x128xi32> to vector<16x128xi32>
    %125 = arith.cmpi eq, %5, %124 : vector<16x128xi32>
    %126 = arith.extui %125 : vector<16x128xi1> to vector<16x128xi32>
    %127 = arith.sitofp %126 : vector<16x128xi32> to vector<16x128xf32>
    %cst_32 = arith.constant dense<0.000000e+00> : vector<96x128xf32>
    %128 = tpu.matmul %0, %127, %cst_32 {dimension_numbers = #tpu.dot_dimension_numbers<[1], [0], [0], [1], [0, 0, 1, 1], [], []>} : vector<96x16xf32>, vector<16x128xf32>, vector<96x128xf32> -> vector<96x128xf32>
    %cst_33 = arith.constant dense<0.000000e+00> : vector<96x128xf32>
    %129 = tpu.matmul %1, %116, %cst_33 {dimension_numbers = #tpu.dot_dimension_numbers<[1], [0], [0], [1], [0, 0, 1, 1], [], []>} : vector<96x32xf32>, vector<32x128xf32>, vector<96x128xf32> -> vector<96x128xf32>
    %130 = vector.extract_strided_slice %128 {offsets = [0, 0], sizes = [32, 128], strides = [1, 1]} : vector<96x128xf32> to vector<32x128xf32>
    %131 = vector.extract_strided_slice %129 {offsets = [0, 0], sizes = [32, 128], strides = [1, 1]} : vector<96x128xf32> to vector<32x128xf32>
    %132 = arith.addf %130, %131 : vector<32x128xf32>
    %133 = arith.negf %132 : vector<32x128xf32>
    %134 = math.exp %133 : vector<32x128xf32>
    %cst_34 = arith.constant 1.000000e+00 : f32
    %135 = vector.broadcast %cst_34 : f32 to vector<32x128xf32>
    %136 = arith.addf %135, %134 : vector<32x128xf32>
    %137 = arith.divf %135, %136 : vector<32x128xf32>
    %138 = vector.extract_strided_slice %128 {offsets = [32, 0], sizes = [32, 128], strides = [1, 1]} : vector<96x128xf32> to vector<32x128xf32>
    %139 = vector.extract_strided_slice %129 {offsets = [32, 0], sizes = [32, 128], strides = [1, 1]} : vector<96x128xf32> to vector<32x128xf32>
    %140 = arith.addf %138, %139 : vector<32x128xf32>
    %141 = arith.negf %140 : vector<32x128xf32>
    %142 = math.exp %141 : vector<32x128xf32>
    %cst_35 = arith.constant 1.000000e+00 : f32
    %143 = vector.broadcast %cst_35 : f32 to vector<32x128xf32>
    %144 = arith.addf %143, %142 : vector<32x128xf32>
    %145 = arith.divf %143, %144 : vector<32x128xf32>
    %146 = vector.extract_strided_slice %128 {offsets = [64, 0], sizes = [32, 128], strides = [1, 1]} : vector<96x128xf32> to vector<32x128xf32>
    %147 = vector.extract_strided_slice %129 {offsets = [64, 0], sizes = [32, 128], strides = [1, 1]} : vector<96x128xf32> to vector<32x128xf32>
    %148 = arith.addf %147, %4 : vector<32x128xf32>
    %149 = arith.mulf %137, %148 : vector<32x128xf32>
    %150 = arith.addf %146, %149 : vector<32x128xf32>
    %151 = math.tanh %150 : vector<32x128xf32>
    %152 = arith.subf %116, %151 : vector<32x128xf32>
    %153 = arith.mulf %145, %152 : vector<32x128xf32>
    %154 = arith.addf %151, %153 : vector<32x128xf32>
    %155 = arith.index_cast %c3_i32 : i32 to index
    %c0_36 = arith.constant 0 : index
    %c0_37 = arith.constant 0 : index
    %156 = vector.load %arg5[%155, %c0_36, %c0_37] : memref<8x32x128xf32, #tpu.memory_space<vmem>>, vector<1x32x128xf32>
    %157 = vector.shape_cast %156 : vector<1x32x128xf32> to vector<32x128xf32>
    %158 = vector.shape_cast %154 : vector<32x128xf32> to vector<1x32x128xf32>
    tpu.vector_store %arg5[%155, %c0_36, %c0_37], %158 {strides = array<i32>} : memref<8x32x128xf32, #tpu.memory_space<vmem>>, vector<1x32x128xf32>,
    %c4_i32 = arith.constant 4 : i32
    %159 = arith.index_cast %c4_i32 : i32 to index
    %c0_38 = arith.constant 0 : index
    %c0_39 = arith.constant 0 : index
    %160 = vector.load %arg0[%159, %c0_38, %c0_39] : memref<8x1x128xi32, #tpu.memory_space<vmem>>, vector<1x1x128xi32>
    %161 = vector.shape_cast %160 : vector<1x1x128xi32> to vector<1x128xi32>
    %162 = vector.broadcast %161 : vector<1x128xi32> to vector<16x128xi32>
    %163 = arith.cmpi eq, %5, %162 : vector<16x128xi32>
    %164 = arith.extui %163 : vector<16x128xi1> to vector<16x128xi32>
    %165 = arith.sitofp %164 : vector<16x128xi32> to vector<16x128xf32>
    %cst_40 = arith.constant dense<0.000000e+00> : vector<96x128xf32>
    %166 = tpu.matmul %0, %165, %cst_40 {dimension_numbers = #tpu.dot_dimension_numbers<[1], [0], [0], [1], [0, 0, 1, 1], [], []>} : vector<96x16xf32>, vector<16x128xf32>, vector<96x128xf32> -> vector<96x128xf32>
    %cst_41 = arith.constant dense<0.000000e+00> : vector<96x128xf32>
    %167 = tpu.matmul %1, %154, %cst_41 {dimension_numbers = #tpu.dot_dimension_numbers<[1], [0], [0], [1], [0, 0, 1, 1], [], []>} : vector<96x32xf32>, vector<32x128xf32>, vector<96x128xf32> -> vector<96x128xf32>
    %168 = vector.extract_strided_slice %166 {offsets = [0, 0], sizes = [32, 128], strides = [1, 1]} : vector<96x128xf32> to vector<32x128xf32>
    %169 = vector.extract_strided_slice %167 {offsets = [0, 0], sizes = [32, 128], strides = [1, 1]} : vector<96x128xf32> to vector<32x128xf32>
    %170 = arith.addf %168, %169 : vector<32x128xf32>
    %171 = arith.negf %170 : vector<32x128xf32>
    %172 = math.exp %171 : vector<32x128xf32>
    %cst_42 = arith.constant 1.000000e+00 : f32
    %173 = vector.broadcast %cst_42 : f32 to vector<32x128xf32>
    %174 = arith.addf %173, %172 : vector<32x128xf32>
    %175 = arith.divf %173, %174 : vector<32x128xf32>
    %176 = vector.extract_strided_slice %166 {offsets = [32, 0], sizes = [32, 128], strides = [1, 1]} : vector<96x128xf32> to vector<32x128xf32>
    %177 = vector.extract_strided_slice %167 {offsets = [32, 0], sizes = [32, 128], strides = [1, 1]} : vector<96x128xf32> to vector<32x128xf32>
    %178 = arith.addf %176, %177 : vector<32x128xf32>
    %179 = arith.negf %178 : vector<32x128xf32>
    %180 = math.exp %179 : vector<32x128xf32>
    %cst_43 = arith.constant 1.000000e+00 : f32
    %181 = vector.broadcast %cst_43 : f32 to vector<32x128xf32>
    %182 = arith.addf %181, %180 : vector<32x128xf32>
    %183 = arith.divf %181, %182 : vector<32x128xf32>
    %184 = vector.extract_strided_slice %166 {offsets = [64, 0], sizes = [32, 128], strides = [1, 1]} : vector<96x128xf32> to vector<32x128xf32>
    %185 = vector.extract_strided_slice %167 {offsets = [64, 0], sizes = [32, 128], strides = [1, 1]} : vector<96x128xf32> to vector<32x128xf32>
    %186 = arith.addf %185, %4 : vector<32x128xf32>
    %187 = arith.mulf %175, %186 : vector<32x128xf32>
    %188 = arith.addf %184, %187 : vector<32x128xf32>
    %189 = math.tanh %188 : vector<32x128xf32>
    %190 = arith.subf %154, %189 : vector<32x128xf32>
    %191 = arith.mulf %183, %190 : vector<32x128xf32>
    %192 = arith.addf %189, %191 : vector<32x128xf32>
    %193 = arith.index_cast %c4_i32 : i32 to index
    %c0_44 = arith.constant 0 : index
    %c0_45 = arith.constant 0 : index
    %194 = vector.load %arg5[%193, %c0_44, %c0_45] : memref<8x32x128xf32, #tpu.memory_space<vmem>>, vector<1x32x128xf32>
    %195 = vector.shape_cast %194 : vector<1x32x128xf32> to vector<32x128xf32>
    %196 = vector.shape_cast %192 : vector<32x128xf32> to vector<1x32x128xf32>
    tpu.vector_store %arg5[%193, %c0_44, %c0_45], %196 {strides = array<i32>} : memref<8x32x128xf32, #tpu.memory_space<vmem>>, vector<1x32x128xf32>,
    %c5_i32 = arith.constant 5 : i32
    %197 = arith.index_cast %c5_i32 : i32 to index
    %c0_46 = arith.constant 0 : index
    %c0_47 = arith.constant 0 : index
    %198 = vector.load %arg0[%197, %c0_46, %c0_47] : memref<8x1x128xi32, #tpu.memory_space<vmem>>, vector<1x1x128xi32>
    %199 = vector.shape_cast %198 : vector<1x1x128xi32> to vector<1x128xi32>
    %200 = vector.broadcast %199 : vector<1x128xi32> to vector<16x128xi32>
    %201 = arith.cmpi eq, %5, %200 : vector<16x128xi32>
    %202 = arith.extui %201 : vector<16x128xi1> to vector<16x128xi32>
    %203 = arith.sitofp %202 : vector<16x128xi32> to vector<16x128xf32>
    %cst_48 = arith.constant dense<0.000000e+00> : vector<96x128xf32>
    %204 = tpu.matmul %0, %203, %cst_48 {dimension_numbers = #tpu.dot_dimension_numbers<[1], [0], [0], [1], [0, 0, 1, 1], [], []>} : vector<96x16xf32>, vector<16x128xf32>, vector<96x128xf32> -> vector<96x128xf32>
    %cst_49 = arith.constant dense<0.000000e+00> : vector<96x128xf32>
    %205 = tpu.matmul %1, %192, %cst_49 {dimension_numbers = #tpu.dot_dimension_numbers<[1], [0], [0], [1], [0, 0, 1, 1], [], []>} : vector<96x32xf32>, vector<32x128xf32>, vector<96x128xf32> -> vector<96x128xf32>
    %206 = vector.extract_strided_slice %204 {offsets = [0, 0], sizes = [32, 128], strides = [1, 1]} : vector<96x128xf32> to vector<32x128xf32>
    %207 = vector.extract_strided_slice %205 {offsets = [0, 0], sizes = [32, 128], strides = [1, 1]} : vector<96x128xf32> to vector<32x128xf32>
    %208 = arith.addf %206, %207 : vector<32x128xf32>
    %209 = arith.negf %208 : vector<32x128xf32>
    %210 = math.exp %209 : vector<32x128xf32>
    %cst_50 = arith.constant 1.000000e+00 : f32
    %211 = vector.broadcast %cst_50 : f32 to vector<32x128xf32>
    %212 = arith.addf %211, %210 : vector<32x128xf32>
    %213 = arith.divf %211, %212 : vector<32x128xf32>
    %214 = vector.extract_strided_slice %204 {offsets = [32, 0], sizes = [32, 128], strides = [1, 1]} : vector<96x128xf32> to vector<32x128xf32>
    %215 = vector.extract_strided_slice %205 {offsets = [32, 0], sizes = [32, 128], strides = [1, 1]} : vector<96x128xf32> to vector<32x128xf32>
    %216 = arith.addf %214, %215 : vector<32x128xf32>
    %217 = arith.negf %216 : vector<32x128xf32>
    %218 = math.exp %217 : vector<32x128xf32>
    %cst_51 = arith.constant 1.000000e+00 : f32
    %219 = vector.broadcast %cst_51 : f32 to vector<32x128xf32>
    %220 = arith.addf %219, %218 : vector<32x128xf32>
    %221 = arith.divf %219, %220 : vector<32x128xf32>
    %222 = vector.extract_strided_slice %204 {offsets = [64, 0], sizes = [32, 128], strides = [1, 1]} : vector<96x128xf32> to vector<32x128xf32>
    %223 = vector.extract_strided_slice %205 {offsets = [64, 0], sizes = [32, 128], strides = [1, 1]} : vector<96x128xf32> to vector<32x128xf32>
    %224 = arith.addf %223, %4 : vector<32x128xf32>
    %225 = arith.mulf %213, %224 : vector<32x128xf32>
    %226 = arith.addf %222, %225 : vector<32x128xf32>
    %227 = math.tanh %226 : vector<32x128xf32>
    %228 = arith.subf %192, %227 : vector<32x128xf32>
    %229 = arith.mulf %221, %228 : vector<32x128xf32>
    %230 = arith.addf %227, %229 : vector<32x128xf32>
    %231 = arith.index_cast %c5_i32 : i32 to index
    %c0_52 = arith.constant 0 : index
    %c0_53 = arith.constant 0 : index
    %232 = vector.load %arg5[%231, %c0_52, %c0_53] : memref<8x32x128xf32, #tpu.memory_space<vmem>>, vector<1x32x128xf32>
    %233 = vector.shape_cast %232 : vector<1x32x128xf32> to vector<32x128xf32>
    %234 = vector.shape_cast %230 : vector<32x128xf32> to vector<1x32x128xf32>
    tpu.vector_store %arg5[%231, %c0_52, %c0_53], %234 {strides = array<i32>} : memref<8x32x128xf32, #tpu.memory_space<vmem>>, vector<1x32x128xf32>,
    %c6_i32 = arith.constant 6 : i32
    %235 = arith.index_cast %c6_i32 : i32 to index
    %c0_54 = arith.constant 0 : index
    %c0_55 = arith.constant 0 : index
    %236 = vector.load %arg0[%235, %c0_54, %c0_55] : memref<8x1x128xi32, #tpu.memory_space<vmem>>, vector<1x1x128xi32>
    %237 = vector.shape_cast %236 : vector<1x1x128xi32> to vector<1x128xi32>
    %238 = vector.broadcast %237 : vector<1x128xi32> to vector<16x128xi32>
    %239 = arith.cmpi eq, %5, %238 : vector<16x128xi32>
    %240 = arith.extui %239 : vector<16x128xi1> to vector<16x128xi32>
    %241 = arith.sitofp %240 : vector<16x128xi32> to vector<16x128xf32>
    %cst_56 = arith.constant dense<0.000000e+00> : vector<96x128xf32>
    %242 = tpu.matmul %0, %241, %cst_56 {dimension_numbers = #tpu.dot_dimension_numbers<[1], [0], [0], [1], [0, 0, 1, 1], [], []>} : vector<96x16xf32>, vector<16x128xf32>, vector<96x128xf32> -> vector<96x128xf32>
    %cst_57 = arith.constant dense<0.000000e+00> : vector<96x128xf32>
    %243 = tpu.matmul %1, %230, %cst_57 {dimension_numbers = #tpu.dot_dimension_numbers<[1], [0], [0], [1], [0, 0, 1, 1], [], []>} : vector<96x32xf32>, vector<32x128xf32>, vector<96x128xf32> -> vector<96x128xf32>
    %244 = vector.extract_strided_slice %242 {offsets = [0, 0], sizes = [32, 128], strides = [1, 1]} : vector<96x128xf32> to vector<32x128xf32>
    %245 = vector.extract_strided_slice %243 {offsets = [0, 0], sizes = [32, 128], strides = [1, 1]} : vector<96x128xf32> to vector<32x128xf32>
    %246 = arith.addf %244, %245 : vector<32x128xf32>
    %247 = arith.negf %246 : vector<32x128xf32>
    %248 = math.exp %247 : vector<32x128xf32>
    %cst_58 = arith.constant 1.000000e+00 : f32
    %249 = vector.broadcast %cst_58 : f32 to vector<32x128xf32>
    %250 = arith.addf %249, %248 : vector<32x128xf32>
    %251 = arith.divf %249, %250 : vector<32x128xf32>
    %252 = vector.extract_strided_slice %242 {offsets = [32, 0], sizes = [32, 128], strides = [1, 1]} : vector<96x128xf32> to vector<32x128xf32>
    %253 = vector.extract_strided_slice %243 {offsets = [32, 0], sizes = [32, 128], strides = [1, 1]} : vector<96x128xf32> to vector<32x128xf32>
    %254 = arith.addf %252, %253 : vector<32x128xf32>
    %255 = arith.negf %254 : vector<32x128xf32>
    %256 = math.exp %255 : vector<32x128xf32>
    %cst_59 = arith.constant 1.000000e+00 : f32
    %257 = vector.broadcast %cst_59 : f32 to vector<32x128xf32>
    %258 = arith.addf %257, %256 : vector<32x128xf32>
    %259 = arith.divf %257, %258 : vector<32x128xf32>
    %260 = vector.extract_strided_slice %242 {offsets = [64, 0], sizes = [32, 128], strides = [1, 1]} : vector<96x128xf32> to vector<32x128xf32>
    %261 = vector.extract_strided_slice %243 {offsets = [64, 0], sizes = [32, 128], strides = [1, 1]} : vector<96x128xf32> to vector<32x128xf32>
    %262 = arith.addf %261, %4 : vector<32x128xf32>
    %263 = arith.mulf %251, %262 : vector<32x128xf32>
    %264 = arith.addf %260, %263 : vector<32x128xf32>
    %265 = math.tanh %264 : vector<32x128xf32>
    %266 = arith.subf %230, %265 : vector<32x128xf32>
    %267 = arith.mulf %259, %266 : vector<32x128xf32>
    %268 = arith.addf %265, %267 : vector<32x128xf32>
    %269 = arith.index_cast %c6_i32 : i32 to index
    %c0_60 = arith.constant 0 : index
    %c0_61 = arith.constant 0 : index
    %270 = vector.load %arg5[%269, %c0_60, %c0_61] : memref<8x32x128xf32, #tpu.memory_space<vmem>>, vector<1x32x128xf32>
    %271 = vector.shape_cast %270 : vector<1x32x128xf32> to vector<32x128xf32>
    %272 = vector.shape_cast %268 : vector<32x128xf32> to vector<1x32x128xf32>
    tpu.vector_store %arg5[%269, %c0_60, %c0_61], %272 {strides = array<i32>} : memref<8x32x128xf32, #tpu.memory_space<vmem>>, vector<1x32x128xf32>,
    %c7_i32 = arith.constant 7 : i32
    %273 = arith.index_cast %c7_i32 : i32 to index
    %c0_62 = arith.constant 0 : index
    %c0_63 = arith.constant 0 : index
    %274 = vector.load %arg0[%273, %c0_62, %c0_63] : memref<8x1x128xi32, #tpu.memory_space<vmem>>, vector<1x1x128xi32>
    %275 = vector.shape_cast %274 : vector<1x1x128xi32> to vector<1x128xi32>
    %276 = vector.broadcast %275 : vector<1x128xi32> to vector<16x128xi32>
    %277 = arith.cmpi eq, %5, %276 : vector<16x128xi32>
    %278 = arith.extui %277 : vector<16x128xi1> to vector<16x128xi32>
    %279 = arith.sitofp %278 : vector<16x128xi32> to vector<16x128xf32>
    %cst_64 = arith.constant dense<0.000000e+00> : vector<96x128xf32>
    %280 = tpu.matmul %0, %279, %cst_64 {dimension_numbers = #tpu.dot_dimension_numbers<[1], [0], [0], [1], [0, 0, 1, 1], [], []>} : vector<96x16xf32>, vector<16x128xf32>, vector<96x128xf32> -> vector<96x128xf32>
    %cst_65 = arith.constant dense<0.000000e+00> : vector<96x128xf32>
    %281 = tpu.matmul %1, %268, %cst_65 {dimension_numbers = #tpu.dot_dimension_numbers<[1], [0], [0], [1], [0, 0, 1, 1], [], []>} : vector<96x32xf32>, vector<32x128xf32>, vector<96x128xf32> -> vector<96x128xf32>
    %282 = vector.extract_strided_slice %280 {offsets = [0, 0], sizes = [32, 128], strides = [1, 1]} : vector<96x128xf32> to vector<32x128xf32>
    %283 = vector.extract_strided_slice %281 {offsets = [0, 0], sizes = [32, 128], strides = [1, 1]} : vector<96x128xf32> to vector<32x128xf32>
    %284 = arith.addf %282, %283 : vector<32x128xf32>
    %285 = arith.negf %284 : vector<32x128xf32>
    %286 = math.exp %285 : vector<32x128xf32>
    %cst_66 = arith.constant 1.000000e+00 : f32
    %287 = vector.broadcast %cst_66 : f32 to vector<32x128xf32>
    %288 = arith.addf %287, %286 : vector<32x128xf32>
    %289 = arith.divf %287, %288 : vector<32x128xf32>
    %290 = vector.extract_strided_slice %280 {offsets = [32, 0], sizes = [32, 128], strides = [1, 1]} : vector<96x128xf32> to vector<32x128xf32>
    %291 = vector.extract_strided_slice %281 {offsets = [32, 0], sizes = [32, 128], strides = [1, 1]} : vector<96x128xf32> to vector<32x128xf32>
    %292 = arith.addf %290, %291 : vector<32x128xf32>
    %293 = arith.negf %292 : vector<32x128xf32>
    %294 = math.exp %293 : vector<32x128xf32>
    %cst_67 = arith.constant 1.000000e+00 : f32
    %295 = vector.broadcast %cst_67 : f32 to vector<32x128xf32>
    %296 = arith.addf %295, %294 : vector<32x128xf32>
    %297 = arith.divf %295, %296 : vector<32x128xf32>
    %298 = vector.extract_strided_slice %280 {offsets = [64, 0], sizes = [32, 128], strides = [1, 1]} : vector<96x128xf32> to vector<32x128xf32>
    %299 = vector.extract_strided_slice %281 {offsets = [64, 0], sizes = [32, 128], strides = [1, 1]} : vector<96x128xf32> to vector<32x128xf32>
    %300 = arith.addf %299, %4 : vector<32x128xf32>
    %301 = arith.mulf %289, %300 : vector<32x128xf32>
    %302 = arith.addf %298, %301 : vector<32x128xf32>
    %303 = math.tanh %302 : vector<32x128xf32>
    %304 = arith.subf %268, %303 : vector<32x128xf32>
    %305 = arith.mulf %297, %304 : vector<32x128xf32>
    %306 = arith.addf %303, %305 : vector<32x128xf32>
    %307 = arith.index_cast %c7_i32 : i32 to index
    %c0_68 = arith.constant 0 : index
    %c0_69 = arith.constant 0 : index
    %308 = vector.load %arg5[%307, %c0_68, %c0_69] : memref<8x32x128xf32, #tpu.memory_space<vmem>>, vector<1x32x128xf32>
    %309 = vector.shape_cast %308 : vector<1x32x128xf32> to vector<32x128xf32>
    %310 = vector.shape_cast %306 : vector<32x128xf32> to vector<1x32x128xf32>
    tpu.vector_store %arg5[%307, %c0_68, %c0_69], %310 {strides = array<i32>} : memref<8x32x128xf32, #tpu.memory_space<vmem>>, vector<1x32x128xf32>,
    %c8_i32 = arith.constant 8 : i32
    return
  }
}

</mosaic_0001>

<llo_original>
// kernel: encoder_rnn_forward.1
$region0: #{encoder_rnn_forward.1}
  #allocation0 [shape = 'u32[]', space=smem, size = 0x4, offset = 0x4, fixed_abs, tag = 'smem constant byte address 0x4 - core index']
  #allocation1 [shape = 'u32[72,128]{1,0:T(1,128)}', space=vmem, size = 0x9000, scoped, tag = 'internal scratch']
  %s0 = inlined_call_operand.vmem [shape: s32[8,1,128], index: 0, kind: input, shape index: {}]
  %s1 = inlined_call_operand.vmem [shape: f32[96,16], index: 1, kind: input, shape index: {}]
  %s2 = inlined_call_operand.vmem [shape: f32[96,32], index: 2, kind: input, shape index: {}]
  %s3 = inlined_call_operand.vmem [shape: f32[32,1], index: 3, kind: input, shape index: {}]
  %s4 = inlined_call_operand.vmem [shape: f32[32,128], index: 4, kind: input, shape index: {}]
  %s5 = inlined_call_operand.vmem [shape: f32[8,32,128], index: 5, kind: output, shape index: {}]
  %s6 = sld [smem:[#allocation0]]
  $region30: #{encoder_rnn_forward.1} parent=0
    _
  %s8 = ssub.s32 1, %s6
  %s9 = scalar_select 0, %s8, %s6
  // Predicated region
  $region2: #{encoder_rnn_forward.1} parent=0 // pred_check
    _
  $region3: #{encoder_rnn_forward.1} parent=0 // pred_check_branch
    %11 = sbr.rel (0) target = $region5
  $region4: #{encoder_rnn_forward.1} parent=0 // pred_region
    _
  $region5: #{encoder_rnn_forward.1} parent=0 // pred_fallthru
    _
  // Predicated region
  $region6: #{encoder_rnn_forward.1} parent=0 // pred_check
    _
  $region7: #{encoder_rnn_forward.1} parent=0 // pred_check_branch
    %13 = sbr.rel (0) target = $region9
  $region8: #{encoder_rnn_forward.1} parent=0 // pred_region
    _
  $region9: #{encoder_rnn_forward.1} parent=0 // pred_fallthru
    _
  // Predicated region
  $region10: #{encoder_rnn_forward.1} parent=0 // pred_check
    _
  $region11: #{encoder_rnn_forward.1} parent=0 // pred_check_branch
    %15 = sbr.rel (0) target = $region13
  $region12: #{encoder_rnn_forward.1} parent=0 // pred_region
    _
  $region13: #{encoder_rnn_forward.1} parent=0 // pred_fallthru
    _
  // Predicated region
  $region14: #{encoder_rnn_forward.1} parent=0 // pred_check
    _
  $region15: #{encoder_rnn_forward.1} parent=0 // pred_check_branch
    %17 = sbr.rel (0) target = $region17
  $region16: #{encoder_rnn_forward.1} parent=0 // pred_region
    _
  $region17: #{encoder_rnn_forward.1} parent=0 // pred_fallthru
    _
  // Predicated region
  $region18: #{encoder_rnn_forward.1} parent=0 // pred_check
    _
  $region19: #{encoder_rnn_forward.1} parent=0 // pred_check_branch
    %19 = sbr.rel (0) target = $region21
  $region20: #{encoder_rnn_forward.1} parent=0 // pred_region
    _
  $region21: #{encoder_rnn_forward.1} parent=0 // pred_fallthru
    _
  %v20 = vld [vmem:[%s1] sm:$0xff]
  %v21 = vld [vmem:[%s1 + $0x8] sm:$0xff]
  %v22 = vld [vmem:[%s1 + $0x10] sm:$0xff]
  %v23 = vld [vmem:[%s1 + $0x18] sm:$0xff]
  %v24 = vld [vmem:[%s1 + $0x20] sm:$0xff]
  %v25 = vld [vmem:[%s1 + $0x28] sm:$0xff]
  %v26 = vld [vmem:[%s1 + $0x30] sm:$0xff]
  %v27 = vld [vmem:[%s1 + $0x38] sm:$0xff]
  %v28 = vld [vmem:[%s1 + $0x40] sm:$0xff]
  %v29 = vld [vmem:[%s1 + $0x48] sm:$0xff]
  %v30 = vld [vmem:[%s1 + $0x50] sm:$0xff]
  %v31 = vld [vmem:[%s1 + $0x58] sm:$0xff]
  %v32 = vld [vmem:[%s2] sm:$0xff]
  %v33 = vld [vmem:[%s2 + $0x8] sm:$0xff]
  %v34 = vld [vmem:[%s2 + $0x10] sm:$0xff]
  %v35 = vld [vmem:[%s2 + $0x18] sm:$0xff]
  %v36 = vld [vmem:[%s2 + $0x20] sm:$0xff]
  %v37 = vld [vmem:[%s2 + $0x28] sm:$0xff]
  %v38 = vld [vmem:[%s2 + $0x30] sm:$0xff]
  %v39 = vld [vmem:[%s2 + $0x38] sm:$0xff]
  %v40 = vld [vmem:[%s2 + $0x40] sm:$0xff]
  %v41 = vld [vmem:[%s2 + $0x48] sm:$0xff]
  %v42 = vld [vmem:[%s2 + $0x50] sm:$0xff]
  %v43 = vld [vmem:[%s2 + $0x58] sm:$0xff]
  %v44 = vld [vmem:[%s3] sm:$0xff]
  %v45 = vld [vmem:[%s3 + $0x8] sm:$0xff]
  %v46 = vld [vmem:[%s3 + $0x10] sm:$0xff]
  %v47 = vld [vmem:[%s3 + $0x18] sm:$0xff]
  %49 = vset.pattern.permute.xlu0 0
  %50 = vperm.xlu0 %49, %v44
  %v51 = vpop.permute.xlu0 %50
  %54 = vset.pattern.permute.xlu0 0
  %55 = vperm.xlu0 %54, %v45
  %v56 = vpop.permute.xlu0 %55
  %59 = vset.pattern.permute.xlu0 0
  %60 = vperm.xlu0 %59, %v46
  %v61 = vpop.permute.xlu0 %60
  %64 = vset.pattern.permute.xlu0 0
  %65 = vperm.xlu0 %64, %v47
  %v66 = vpop.permute.xlu0 %65
  %v68 = vlaneseq
  %v69 = vshrl.u32 %v68, 7
  %v70 = vadd.s32 %v69, 8
  %v71 = vld [vmem:[%s4] sm:$0xff]
  %v72 = vld [vmem:[%s4 + $0x8] sm:$0xff]
  %v73 = vld [vmem:[%s4 + $0x10] sm:$0xff]
  %v74 = vld [vmem:[%s4 + $0x18] sm:$0xff]
  %v75 = vld [vmem:[%s0] sm:$0x1]
  %v76 = vperm.slane %v75, 0
  %vm77 = vcmp.eq.s32.totalorder %v69, %v76
  %vm78 = vcmp.eq.s32.totalorder %v70, %v76
  %v79 = vsel %vm77, 1, 0
  %v80 = vsel %vm78, 1, 0
  %v81 = vcvt.s32.f32 %v79
  %v82 = vcvt.s32.f32 %v80
  %vm83 = vcmask 130048
  %v85 = vsel %vm83, %v20, 0
  %v88 = vsel %vm83, %v21, 0
  %v91 = vsel %vm83, %v22, 0
  %v94 = vsel %vm83, %v23, 0
  %v97 = vsel %vm83, %v24, 0
  %v100 = vsel %vm83, %v25, 0
  %v103 = vsel %vm83, %v26, 0
  %v106 = vsel %vm83, %v27, 0
  %v109 = vsel %vm83, %v28, 0
  %v112 = vsel %vm83, %v29, 0
  %v115 = vsel %vm83, %v30, 0
  %v118 = vsel %vm83, %v31, 0
  %120 = vmatpush.msra.mxu0 0.0
  %121 = vmatpush.msra.mxu0 0.0
  %122 = vmatpush.msra.mxu0 0.0
  %123 = vmatpush.msra.mxu0 0.0
  %124 = vmatpush.msra.mxu0 0.0
  %125 = vmatpush.msra.mxu0 0.0
  %126 = vmatpush.msra.mxu0 0.0
  %127 = vmatpush.msra.mxu0 0.0
  %128 = vmatpush.msra.mxu0 0.0
  %129 = vmatpush.msra.mxu0 0.0
  %130 = vmatpush.msra.mxu0 0.0
  %131 = vmatpush.msra.mxu0 0.0
  %132 = vmatpush.msra.mxu0 0.0
  %133 = vmatpush.msra.mxu0 0.0
  %134 = vmatpush.msra.mxu0 %v82
  %135 = vmatpush.msra.mxu0 %v81
  %136 = vmatmul.f32.gmra.mxu0 %v85
  %v137 = vpop.f32.mrf.mxu0
  %v138 = vadd.f32 0.0, %v137
  %139 = vmatmul.f32.gmra.mxu0 %v88
  %v140 = vpop.f32.mrf.mxu0
  %v141 = vadd.f32 0.0, %v140
  %142 = vmatmul.f32.gmra.mxu0 %v91
  %v143 = vpop.f32.mrf.mxu0
  %v144 = vadd.f32 0.0, %v143
  %145 = vmatmul.f32.gmra.mxu0 %v94
  %v146 = vpop.f32.mrf.mxu0
  %v147 = vadd.f32 0.0, %v146
  %148 = vmatmul.f32.gmra.mxu0 %v97
  %v149 = vpop.f32.mrf.mxu0
  %v150 = vadd.f32 0.0, %v149
  %151 = vmatmul.f32.gmra.mxu0 %v100
  %v152 = vpop.f32.mrf.mxu0
  %v153 = vadd.f32 0.0, %v152
  %154 = vmatmul.f32.gmra.mxu0 %v103
  %v155 = vpop.f32.mrf.mxu0
  %v156 = vadd.f32 0.0, %v155
  %157 = vmatmul.f32.gmra.mxu0 %v106
  %v158 = vpop.f32.mrf.mxu0
  %v159 = vadd.f32 0.0, %v158
  %160 = vmatmul.f32.gmra.mxu0 %v109
  %v161 = vpop.f32.mrf.mxu0
  %v162 = vadd.f32 0.0, %v161
  %163 = vmatmul.f32.gmra.mxu0 %v112
  %v164 = vpop.f32.mrf.mxu0
  %v165 = vadd.f32 0.0, %v164
  %166 = vmatmul.f32.gmra.mxu0 %v115
  %v167 = vpop.f32.mrf.mxu0
  %v168 = vadd.f32 0.0, %v167
  %169 = vmatmul.f32.gmra.mxu0 %v118
  %v170 = vpop.f32.mrf.mxu0
  %v171 = vadd.f32 0.0, %v170
  %172 = vdwg.mxu0
  %vm173 = vcmask 261120
  %v175 = vsel %vm173, %v32, 0
  %v178 = vsel %vm173, %v33, 0
  %v181 = vsel %vm173, %v34, 0
  %v184 = vsel %vm173, %v35, 0
  %v187 = vsel %vm173, %v36, 0
  %v190 = vsel %vm173, %v37, 0
  %v193 = vsel %vm173, %v38, 0
  %v196 = vsel %vm173, %v39, 0
  %v199 = vsel %vm173, %v40, 0
  %v202 = vsel %vm173, %v41, 0
  %v205 = vsel %vm173, %v42, 0
  %v208 = vsel %vm173, %v43, 0
  %210 = vmatpush.msra.mxu0 0.0
  %211 = vmatpush.msra.mxu0 0.0
  %212 = vmatpush.msra.mxu0 0.0
  %213 = vmatpush.msra.mxu0 0.0
  %214 = vmatpush.msra.mxu0 0.0
  %215 = vmatpush.msra.mxu0 0.0
  %216 = vmatpush.msra.mxu0 0.0
  %217 = vmatpush.msra.mxu0 0.0
  %218 = vmatpush.msra.mxu0 0.0
  %219 = vmatpush.msra.mxu0 0.0
  %220 = vmatpush.msra.mxu0 0.0
  %221 = vmatpush.msra.mxu0 0.0
  %222 = vmatpush.msra.mxu0 %v74
  %223 = vmatpush.msra.mxu0 %v73
  %224 = vmatpush.msra.mxu0 %v72
  %225 = vmatpush.msra.mxu0 %v71
  %226 = vmatmul.f32.gmra.mxu0 %v175
  %v227 = vpop.f32.mrf.mxu0
  %v228 = vadd.f32 0.0, %v227
  %229 = vmatmul.f32.gmra.mxu0 %v178
  %v230 = vpop.f32.mrf.mxu0
  %v231 = vadd.f32 0.0, %v230
  %232 = vmatmul.f32.gmra.mxu0 %v181
  %v233 = vpop.f32.mrf.mxu0
  %v234 = vadd.f32 0.0, %v233
  %235 = vmatmul.f32.gmra.mxu0 %v184
  %v236 = vpop.f32.mrf.mxu0
  %v237 = vadd.f32 0.0, %v236
  %238 = vmatmul.f32.gmra.mxu0 %v187
  %v239 = vpop.f32.mrf.mxu0
  %v240 = vadd.f32 0.0, %v239
  %241 = vmatmul.f32.gmra.mxu0 %v190
  %v242 = vpop.f32.mrf.mxu0
  %v243 = vadd.f32 0.0, %v242
  %244 = vmatmul.f32.gmra.mxu0 %v193
  %v245 = vpop.f32.mrf.mxu0
  %v246 = vadd.f32 0.0, %v245
  %247 = vmatmul.f32.gmra.mxu0 %v196
  %v248 = vpop.f32.mrf.mxu0
  %v249 = vadd.f32 0.0, %v248
  %250 = vmatmul.f32.gmra.mxu0 %v199
  %v251 = vpop.f32.mrf.mxu0
  %v252 = vadd.f32 0.0, %v251
  %253 = vmatmul.f32.gmra.mxu0 %v202
  %v254 = vpop.f32.mrf.mxu0
  %v255 = vadd.f32 0.0, %v254
  %256 = vmatmul.f32.gmra.mxu0 %v205
  %v257 = vpop.f32.mrf.mxu0
  %v258 = vadd.f32 0.0, %v257
  %259 = vmatmul.f32.gmra.mxu0 %v208
  %v260 = vpop.f32.mrf.mxu0
  %v261 = vadd.f32 0.0, %v260
  %262 = vdwg.mxu0
  %v263 = vadd.f32 %v138, %v228
  %v264 = vadd.f32 %v141, %v231
  %v265 = vadd.f32 %v144, %v234
  %v266 = vadd.f32 %v147, %v237
  %v267 = vxor.u32 %v263, 2147483648
  %v268 = vxor.u32 %v264, 2147483648
  %v269 = vxor.u32 %v265, 2147483648
  %v270 = vxor.u32 %v266, 2147483648
  %v271 = vmul.f32 %v267, 1.442695
  %v272 = vpow.pop %v271
  %v273 = vmul.f32 %v268, 1.442695
  %v274 = vpow.pop %v273
  %v275 = vmul.f32 %v269, 1.442695
  %v276 = vpow.pop %v275
  %v277 = vmul.f32 %v270, 1.442695
  %v278 = vpow.pop %v277
  %v279 = vadd.f32 %v272, 1.0
  %v280 = vadd.f32 %v274, 1.0
  %v281 = vadd.f32 %v276, 1.0
  %v282 = vadd.f32 %v278, 1.0
  %v283 = vrcp.pop %v279
  %v284 = vmul.f32 %v279, %v283
  %v285 = vsub.f32 1.0, %v284
  %v286 = vmul.f32 %v283, %v285
  %v287 = vadd.f32 %v283, %v286
  %vm288 = vweird.f32 %v279
  %vm289 = vweird.f32 %v283
  %vm290 = vmor %vm288, %vm289
  %v291 = vsel %vm290, %v283, %v287
  %v292 = vand.u32 2147483647, %v279
  %vm293 = vcmp.eq.f32.partialorder %v292, 8.507059e+37
  %v294 = vand.u32 %v279, 2147483648
  %v295 = vor.u32 1.1754944e-38, %v294
  %v296 = vsel %vm293, %v295, %v291
  %v297 = vmul.f32 1.0, %v296
  %v298 = vrcp.pop %v280
  %v299 = vmul.f32 %v280, %v298
  %v300 = vsub.f32 1.0, %v299
  %v301 = vmul.f32 %v298, %v300
  %v302 = vadd.f32 %v298, %v301
  %vm303 = vweird.f32 %v280
  %vm304 = vweird.f32 %v298
  %vm305 = vmor %vm303, %vm304
  %v306 = vsel %vm305, %v298, %v302
  %v307 = vand.u32 2147483647, %v280
  %vm308 = vcmp.eq.f32.partialorder %v307, 8.507059e+37
  %v309 = vand.u32 %v280, 2147483648
  %v310 = vor.u32 1.1754944e-38, %v309
  %v311 = vsel %vm308, %v310, %v306
  %v312 = vmul.f32 1.0, %v311
  %v313 = vrcp.pop %v281
  %v314 = vmul.f32 %v281, %v313
  %v315 = vsub.f32 1.0, %v314
  %v316 = vmul.f32 %v313, %v315
  %v317 = vadd.f32 %v313, %v316
  %vm318 = vweird.f32 %v281
  %vm319 = vweird.f32 %v313
  %vm320 = vmor %vm318, %vm319
  %v321 = vsel %vm320, %v313, %v317
  %v322 = vand.u32 2147483647, %v281
  %vm323 = vcmp.eq.f32.partialorder %v322, 8.507059e+37
  %v324 = vand.u32 %v281, 2147483648
  %v325 = vor.u32 1.1754944e-38, %v324
  %v326 = vsel %vm323, %v325, %v321
  %v327 = vmul.f32 1.0, %v326
  %v328 = vrcp.pop %v282
  %v329 = vmul.f32 %v282, %v328
  %v330 = vsub.f32 1.0, %v329
  %v331 = vmul.f32 %v328, %v330
  %v332 = vadd.f32 %v328, %v331
  %vm333 = vweird.f32 %v282
  %vm334 = vweird.f32 %v328
  %vm335 = vmor %vm333, %vm334
  %v336 = vsel %vm335, %v328, %v332
  %v337 = vand.u32 2147483647, %v282
  %vm338 = vcmp.eq.f32.partialorder %v337, 8.507059e+37
  %v339 = vand.u32 %v282, 2147483648
  %v340 = vor.u32 1.1754944e-38, %v339
  %v341 = vsel %vm338, %v340, %v336
  %v342 = vmul.f32 1.0, %v341
  %v343 = vadd.f32 %v150, %v240
  %v344 = vadd.f32 %v153, %v243
  %v345 = vadd.f32 %v156, %v246
  %v346 = vadd.f32 %v159, %v249
  %v347 = vxor.u32 %v343, 2147483648
  %v348 = vxor.u32 %v344, 2147483648
  %v349 = vxor.u32 %v345, 2147483648
  %v350 = vxor.u32 %v346, 2147483648
  %v351 = vmul.f32 %v347, 1.442695
  %v352 = vpow.pop %v351
  %v353 = vmul.f32 %v348, 1.442695
  %v354 = vpow.pop %v353
  %v355 = vmul.f32 %v349, 1.442695
  %v356 = vpow.pop %v355
  %v357 = vmul.f32 %v350, 1.442695
  %v358 = vpow.pop %v357
  %v359 = vadd.f32 %v352, 1.0
  %v360 = vadd.f32 %v354, 1.0
  %v361 = vadd.f32 %v356, 1.0
  %v362 = vadd.f32 %v358, 1.0
  %v363 = vrcp.pop %v359
  %v364 = vmul.f32 %v359, %v363
  %v365 = vsub.f32 1.0, %v364
  %v366 = vmul.f32 %v363, %v365
  %v367 = vadd.f32 %v363, %v366
  %vm368 = vweird.f32 %v359
  %vm369 = vweird.f32 %v363
  %vm370 = vmor %vm368, %vm369
  %v371 = vsel %vm370, %v363, %v367
  %v372 = vand.u32 2147483647, %v359
  %vm373 = vcmp.eq.f32.partialorder %v372, 8.507059e+37
  %v374 = vand.u32 %v359, 2147483648
  %v375 = vor.u32 1.1754944e-38, %v374
  %v376 = vsel %vm373, %v375, %v371
  %v377 = vmul.f32 1.0, %v376
  %v378 = vrcp.pop %v360
  %v379 = vmul.f32 %v360, %v378
  %v380 = vsub.f32 1.0, %v379
  %v381 = vmul.f32 %v378, %v380
  %v382 = vadd.f32 %v378, %v381
  %vm383 = vweird.f32 %v360
  %vm384 = vweird.f32 %v378
  %vm385 = vmor %vm383, %vm384
  %v386 = vsel %vm385, %v378, %v382
  %v387 = vand.u32 2147483647, %v360
  %vm388 = vcmp.eq.f32.partialorder %v387, 8.507059e+37
  %v389 = vand.u32 %v360, 2147483648
  %v390 = vor.u32 1.1754944e-38, %v389
  %v391 = vsel %vm388, %v390, %v386
  %v392 = vmul.f32 1.0, %v391
  %v393 = vrcp.pop %v361
  %v394 = vmul.f32 %v361, %v393
  %v395 = vsub.f32 1.0, %v394
  %v396 = vmul.f32 %v393, %v395
  %v397 = vadd.f32 %v393, %v396
  %vm398 = vweird.f32 %v361
  %vm399 = vweird.f32 %v393
  %vm400 = vmor %vm398, %vm399
  %v401 = vsel %vm400, %v393, %v397
  %v402 = vand.u32 2147483647, %v361
  %vm403 = vcmp.eq.f32.partialorder %v402, 8.507059e+37
  %v404 = vand.u32 %v361, 2147483648
  %v405 = vor.u32 1.1754944e-38, %v404
  %v406 = vsel %vm403, %v405, %v401
  %v407 = vmul.f32 1.0, %v406
  %v408 = vrcp.pop %v362
  %v409 = vmul.f32 %v362, %v408
  %v410 = vsub.f32 1.0, %v409
  %v411 = vmul.f32 %v408, %v410
  %v412 = vadd.f32 %v408, %v411
  %vm413 = vweird.f32 %v362
  %vm414 = vweird.f32 %v408
  %vm415 = vmor %vm413, %vm414
  %v416 = vsel %vm415, %v408, %v412
  %v417 = vand.u32 2147483647, %v362
  %vm418 = vcmp.eq.f32.partialorder %v417, 8.507059e+37
  %v419 = vand.u32 %v362, 2147483648
  %v420 = vor.u32 1.1754944e-38, %v419
  %v421 = vsel %vm418, %v420, %v416
  %v422 = vmul.f32 1.0, %v421
  %v423 = vadd.f32 %v252, %v51
  %v424 = vadd.f32 %v255, %v56
  %v425 = vadd.f32 %v258, %v61
  %v426 = vadd.f32 %v261, %v66
  %v427 = vmul.f32 %v297, %v423
  %v428 = vmul.f32 %v312, %v424
  %v429 = vmul.f32 %v327, %v425
  %v430 = vmul.f32 %v342, %v426
  %v431 = vadd.f32 %v162, %v427
  %v432 = vadd.f32 %v165, %v428
  %v433 = vadd.f32 %v168, %v429
  %v434 = vadd.f32 %v171, %v430
  %v435 = vtanh.pop %v431
  %v436 = vtanh.pop %v432
  %v437 = vtanh.pop %v433
  %v438 = vtanh.pop %v434
  %v439 = vsub.f32 %v71, %v435
  %v440 = vsub.f32 %v72, %v436
  %v441 = vsub.f32 %v73, %v437
  %v442 = vsub.f32 %v74, %v438
  %v443 = vmul.f32 %v377, %v439
  %v444 = vmul.f32 %v392, %v440
  %v445 = vmul.f32 %v407, %v441
  %v446 = vmul.f32 %v422, %v442
  %v447 = vadd.f32 %v435, %v443
  %v448 = vadd.f32 %v436, %v444
  %v449 = vadd.f32 %v437, %v445
  %v450 = vadd.f32 %v438, %v446
  %451 = vst [vmem:[%s5] sm:$0xff] %v447
  %452 = vst [vmem:[%s5 + $0x8] sm:$0xff] %v448
  %453 = vst [vmem:[%s5 + $0x10] sm:$0xff] %v449
  %454 = vst [vmem:[%s5 + $0x18] sm:$0xff] %v450
  %s455 = scalar_lea.vmem %s0, 1
  %v456 = vld [vmem:[%s455] sm:$0x1]
  %v457 = vperm.slane %v456, 0
  %vm458 = vcmp.eq.s32.totalorder %v69, %v457
  %vm459 = vcmp.eq.s32.totalorder %v70, %v457
  %v460 = vsel %vm458, 1, 0
  %v461 = vsel %vm459, 1, 0
  %v462 = vcvt.s32.f32 %v460
  %v463 = vcvt.s32.f32 %v461
  %464 = vmatpush.msra.mxu0 0.0
  %465 = vmatpush.msra.mxu0 0.0
  %466 = vmatpush.msra.mxu0 0.0
  %467 = vmatpush.msra.mxu0 0.0
  %468 = vmatpush.msra.mxu0 0.0
  %469 = vmatpush.msra.mxu0 0.0
  %470 = vmatpush.msra.mxu0 0.0
  %471 = vmatpush.msra.mxu0 0.0
  %472 = vmatpush.msra.mxu0 0.0
  %473 = vmatpush.msra.mxu0 0.0
  %474 = vmatpush.msra.mxu0 0.0
  %475 = vmatpush.msra.mxu0 0.0
  %476 = vmatpush.msra.mxu0 0.0
  %477 = vmatpush.msra.mxu0 0.0
  %478 = vmatpush.msra.mxu0 %v463
  %479 = vmatpush.msra.mxu0 %v462
  %480 = vmatmul.f32.gmra.mxu0 %v85
  %v481 = vpop.f32.mrf.mxu0
  %v482 = vadd.f32 0.0, %v481
  %483 = vmatmul.f32.gmra.mxu0 %v88
  %v484 = vpop.f32.mrf.mxu0
  %v485 = vadd.f32 0.0, %v484
  %486 = vmatmul.f32.gmra.mxu0 %v91
  %v487 = vpop.f32.mrf.mxu0
  %v488 = vadd.f32 0.0, %v487
  %489 = vmatmul.f32.gmra.mxu0 %v94
  %v490 = vpop.f32.mrf.mxu0
  %v491 = vadd.f32 0.0, %v490
  %492 = vmatmul.f32.gmra.mxu0 %v97
  %v493 = vpop.f32.mrf.mxu0
  %v494 = vadd.f32 0.0, %v493
  %495 = vmatmul.f32.gmra.mxu0 %v100
  %v496 = vpop.f32.mrf.mxu0
  %v497 = vadd.f32 0.0, %v496
  %498 = vmatmul.f32.gmra.mxu0 %v103
  %v499 = vpop.f32.mrf.mxu0
  %v500 = vadd.f32 0.0, %v499
  %501 = vmatmul.f32.gmra.mxu0 %v106
  %v502 = vpop.f32.mrf.mxu0
  %v503 = vadd.f32 0.0, %v502
  %504 = vmatmul.f32.gmra.mxu0 %v109
  %v505 = vpop.f32.mrf.mxu0
  %v506 = vadd.f32 0.0, %v505
  %507 = vmatmul.f32.gmra.mxu0 %v112
  %v508 = vpop.f32.mrf.mxu0
  %v509 = vadd.f32 0.0, %v508
  %510 = vmatmul.f32.gmra.mxu0 %v115
  %v511 = vpop.f32.mrf.mxu0
  %v512 = vadd.f32 0.0, %v511
  %513 = vmatmul.f32.gmra.mxu0 %v118
  %v514 = vpop.f32.mrf.mxu0
  %v515 = vadd.f32 0.0, %v514
  %516 = vdwg.mxu0
  %517 = vmatpush.msra.mxu0 0.0
  %518 = vmatpush.msra.mxu0 0.0
  %519 = vmatpush.msra.mxu0 0.0
  %520 = vmatpush.msra.mxu0 0.0
  %521 = vmatpush.msra.mxu0 0.0
  %522 = vmatpush.msra.mxu0 0.0
  %523 = vmatpush.msra.mxu0 0.0
  %524 = vmatpush.msra.mxu0 0.0
  %525 = vmatpush.msra.mxu0 0.0
  %526 = vmatpush.msra.mxu0 0.0
  %527 = vmatpush.msra.mxu0 0.0
  %528 = vmatpush.msra.mxu0 0.0
  %529 = vmatpush.msra.mxu0 %v450
  %530 = vmatpush.msra.mxu0 %v449
  %531 = vmatpush.msra.mxu0 %v448
  %532 = vmatpush.msra.mxu0 %v447
  %533 = vmatmul.f32.gmra.mxu0 %v175
  %v534 = vpop.f32.mrf.mxu0
  %v535 = vadd.f32 0.0, %v534
  %536 = vmatmul.f32.gmra.mxu0 %v178
  %v537 = vpop.f32.mrf.mxu0
  %v538 = vadd.f32 0.0, %v537
  %539 = vmatmul.f32.gmra.mxu0 %v181
  %v540 = vpop.f32.mrf.mxu0
  %v541 = vadd.f32 0.0, %v540
  %542 = vmatmul.f32.gmra.mxu0 %v184
  %v543 = vpop.f32.mrf.mxu0
  %v544 = vadd.f32 0.0, %v543
  %545 = vmatmul.f32.gmra.mxu0 %v187
  %v546 = vpop.f32.mrf.mxu0
  %v547 = vadd.f32 0.0, %v546
  %548 = vmatmul.f32.gmra.mxu0 %v190
  %v549 = vpop.f32.mrf.mxu0
  %v550 = vadd.f32 0.0, %v549
  %551 = vmatmul.f32.gmra.mxu0 %v193
  %v552 = vpop.f32.mrf.mxu0
  %v553 = vadd.f32 0.0, %v552
  %554 = vmatmul.f32.gmra.mxu0 %v196
  %v555 = vpop.f32.mrf.mxu0
  %v556 = vadd.f32 0.0, %v555
  %557 = vmatmul.f32.gmra.mxu0 %v199
  %v558 = vpop.f32.mrf.mxu0
  %v559 = vadd.f32 0.0, %v558
  %560 = vmatmul.f32.gmra.mxu0 %v202
  %v561 = vpop.f32.mrf.mxu0
  %v562 = vadd.f32 0.0, %v561
  %563 = vmatmul.f32.gmra.mxu0 %v205
  %v564 = vpop.f32.mrf.mxu0
  %v565 = vadd.f32 0.0, %v564
  %566 = vmatmul.f32.gmra.mxu0 %v208
  %v567 = vpop.f32.mrf.mxu0
  %v568 = vadd.f32 0.0, %v567
  %569 = vdwg.mxu0
  %v570 = vadd.f32 %v482, %v535
  %v571 = vadd.f32 %v485, %v538
  %v572 = vadd.f32 %v488, %v541
  %v573 = vadd.f32 %v491, %v544
  %v574 = vxor.u32 %v570, 2147483648
  %v575 = vxor.u32 %v571, 2147483648
  %v576 = vxor.u32 %v572, 2147483648
  %v577 = vxor.u32 %v573, 2147483648
  %v578 = vmul.f32 %v574, 1.442695
  %v579 = vpow.pop %v578
  %v580 = vmul.f32 %v575, 1.442695
  %v581 = vpow.pop %v580
  %v582 = vmul.f32 %v576, 1.442695
  %v583 = vpow.pop %v582
  %v584 = vmul.f32 %v577, 1.442695
  %v585 = vpow.pop %v584
  %v586 = vadd.f32 %v579, 1.0
  %v587 = vadd.f32 %v581, 1.0
  %v588 = vadd.f32 %v583, 1.0
  %v589 = vadd.f32 %v585, 1.0
  %v590 = vrcp.pop %v586
  %v591 = vmul.f32 %v586, %v590
  %v592 = vsub.f32 1.0, %v591
  %v593 = vmul.f32 %v590, %v592
  %v594 = vadd.f32 %v590, %v593
  %vm595 = vweird.f32 %v586
  %vm596 = vweird.f32 %v590
  %vm597 = vmor %vm595, %vm596
  %v598 = vsel %vm597, %v590, %v594
  %v599 = vand.u32 2147483647, %v586
  %vm600 = vcmp.eq.f32.partialorder %v599, 8.507059e+37
  %v601 = vand.u32 %v586, 2147483648
  %v602 = vor.u32 1.1754944e-38, %v601
  %v603 = vsel %vm600, %v602, %v598
  %v604 = vmul.f32 1.0, %v603
  %v605 = vrcp.pop %v587
  %v606 = vmul.f32 %v587, %v605
  %v607 = vsub.f32 1.0, %v606
  %v608 = vmul.f32 %v605, %v607
  %v609 = vadd.f32 %v605, %v608
  %vm610 = vweird.f32 %v587
  %vm611 = vweird.f32 %v605
  %vm612 = vmor %vm610, %vm611
  %v613 = vsel %vm612, %v605, %v609
  %v614 = vand.u32 2147483647, %v587
  %vm615 = vcmp.eq.f32.partialorder %v614, 8.507059e+37
  %v616 = vand.u32 %v587, 2147483648
  %v617 = vor.u32 1.1754944e-38, %v616
  %v618 = vsel %vm615, %v617, %v613
  %v619 = vmul.f32 1.0, %v618
  %v620 = vrcp.pop %v588
  %v621 = vmul.f32 %v588, %v620
  %v622 = vsub.f32 1.0, %v621
  %v623 = vmul.f32 %v620, %v622
  %v624 = vadd.f32 %v620, %v623
  %vm625 = vweird.f32 %v588
  %vm626 = vweird.f32 %v620
  %vm627 = vmor %vm625, %vm626
  %v628 = vsel %vm627, %v620, %v624
  %v629 = vand.u32 2147483647, %v588
  %vm630 = vcmp.eq.f32.partialorder %v629, 8.507059e+37
  %v631 = vand.u32 %v588, 2147483648
  %v632 = vor.u32 1.1754944e-38, %v631
  %v633 = vsel %vm630, %v632, %v628
  %v634 = vmul.f32 1.0, %v633
  %v635 = vrcp.pop %v589
  %v636 = vmul.f32 %v589, %v635
  %v637 = vsub.f32 1.0, %v636
  %v638 = vmul.f32 %v635, %v637
  %v639 = vadd.f32 %v635, %v638
  %vm640 = vweird.f32 %v589
  %vm641 = vweird.f32 %v635
  %vm642 = vmor %vm640, %vm641
  %v643 = vsel %vm642, %v635, %v639
  %v644 = vand.u32 2147483647, %v589
  %vm645 = vcmp.eq.f32.partialorder %v644, 8.507059e+37
  %v646 = vand.u32 %v589, 2147483648
  %v647 = vor.u32 1.1754944e-38, %v646
  %v648 = vsel %vm645, %v647, %v643
  %v649 = vmul.f32 1.0, %v648
  %v650 = vadd.f32 %v494, %v547
  %v651 = vadd.f32 %v497, %v550
  %v652 = vadd.f32 %v500, %v553
  %v653 = vadd.f32 %v503, %v556
  %v654 = vxor.u32 %v650, 2147483648
  %v655 = vxor.u32 %v651, 2147483648
  %v656 = vxor.u32 %v652, 2147483648
  %v657 = vxor.u32 %v653, 2147483648
  %v658 = vmul.f32 %v654, 1.442695
  %v659 = vpow.pop %v658
  %v660 = vmul.f32 %v655, 1.442695
  %v661 = vpow.pop %v660
  %v662 = vmul.f32 %v656, 1.442695
  %v663 = vpow.pop %v662
  %v664 = vmul.f32 %v657, 1.442695
  %v665 = vpow.pop %v664
  %v666 = vadd.f32 %v659, 1.0
  %v667 = vadd.f32 %v661, 1.0
  %v668 = vadd.f32 %v663, 1.0
  %v669 = vadd.f32 %v665, 1.0
  %v670 = vrcp.pop %v666
  %v671 = vmul.f32 %v666, %v670
  %v672 = vsub.f32 1.0, %v671
  %v673 = vmul.f32 %v670, %v672
  %v674 = vadd.f32 %v670, %v673
  %vm675 = vweird.f32 %v666
  %vm676 = vweird.f32 %v670
  %vm677 = vmor %vm675, %vm676
  %v678 = vsel %vm677, %v670, %v674
  %v679 = vand.u32 2147483647, %v666
  %vm680 = vcmp.eq.f32.partialorder %v679, 8.507059e+37
  %v681 = vand.u32 %v666, 2147483648
  %v682 = vor.u32 1.1754944e-38, %v681
  %v683 = vsel %vm680, %v682, %v678
  %v684 = vmul.f32 1.0, %v683
  %v685 = vrcp.pop %v667
  %v686 = vmul.f32 %v667, %v685
  %v687 = vsub.f32 1.0, %v686
  %v688 = vmul.f32 %v685, %v687
  %v689 = vadd.f32 %v685, %v688
  %vm690 = vweird.f32 %v667
  %vm691 = vweird.f32 %v685
  %vm692 = vmor %vm690, %vm691
  %v693 = vsel %vm692, %v685, %v689
  %v694 = vand.u32 2147483647, %v667
  %vm695 = vcmp.eq.f32.partialorder %v694, 8.507059e+37
  %v696 = vand.u32 %v667, 2147483648
  %v697 = vor.u32 1.1754944e-38, %v696
  %v698 = vsel %vm695, %v697, %v693
  %v699 = vmul.f32 1.0, %v698
  %v700 = vrcp.pop %v668
  %v701 = vmul.f32 %v668, %v700
  %v702 = vsub.f32 1.0, %v701
  %v703 = vmul.f32 %v700, %v702
  %v704 = vadd.f32 %v700, %v703
  %vm705 = vweird.f32 %v668
  %vm706 = vweird.f32 %v700
  %vm707 = vmor %vm705, %vm706
  %v708 = vsel %vm707, %v700, %v704
  %v709 = vand.u32 2147483647, %v668
  %vm710 = vcmp.eq.f32.partialorder %v709, 8.507059e+37
  %v711 = vand.u32 %v668, 2147483648
  %v712 = vor.u32 1.1754944e-38, %v711
  %v713 = vsel %vm710, %v712, %v708
  %v714 = vmul.f32 1.0, %v713
  %v715 = vrcp.pop %v669
  %v716 = vmul.f32 %v669, %v715
  %v717 = vsub.f32 1.0, %v716
  %v718 = vmul.f32 %v715, %v717
  %v719 = vadd.f32 %v715, %v718
  %vm720 = vweird.f32 %v669
  %vm721 = vweird.f32 %v715
  %vm722 = vmor %vm720, %vm721
  %v723 = vsel %vm722, %v715, %v719
  %v724 = vand.u32 2147483647, %v669
  %vm725 = vcmp.eq.f32.partialorder %v724, 8.507059e+37
  %v726 = vand.u32 %v669, 2147483648
  %v727 = vor.u32 1.1754944e-38, %v726
  %v728 = vsel %vm725, %v727, %v723
  %v729 = vmul.f32 1.0, %v728
  %v730 = vadd.f32 %v559, %v51
  %v731 = vadd.f32 %v562, %v56
  %v732 = vadd.f32 %v565, %v61
  %v733 = vadd.f32 %v568, %v66
  %v734 = vmul.f32 %v604, %v730
  %v735 = vmul.f32 %v619, %v731
  %v736 = vmul.f32 %v634, %v732
  %v737 = vmul.f32 %v649, %v733
  %v738 = vadd.f32 %v506, %v734
  %v739 = vadd.f32 %v509, %v735
  %v740 = vadd.f32 %v512, %v736
  %v741 = vadd.f32 %v515, %v737
  %v742 = vtanh.pop %v738
  %v743 = vtanh.pop %v739
  %v744 = vtanh.pop %v740
  %v745 = vtanh.pop %v741
  %v746 = vsub.f32 %v447, %v742
  %v747 = vsub.f32 %v448, %v743
  %v748 = vsub.f32 %v449, %v744
  %v749 = vsub.f32 %v450, %v745
  %v750 = vmul.f32 %v684, %v746
  %v751 = vmul.f32 %v699, %v747
  %v752 = vmul.f32 %v714, %v748
  %v753 = vmul.f32 %v729, %v749
  %v754 = vadd.f32 %v742, %v750
  %v755 = vadd.f32 %v743, %v751
  %v756 = vadd.f32 %v744, %v752
  %v757 = vadd.f32 %v745, %v753
  %s758 = scalar_lea.vmem %s5, 32
  %759 = vst [vmem:[%s758] sm:$0xff] %v754
  %760 = vst [vmem:[%s758 + $0x8] sm:$0xff] %v755
  %761 = vst [vmem:[%s758 + $0x10] sm:$0xff] %v756
  %762 = vst [vmem:[%s758 + $0x18] sm:$0xff] %v757
  %s763 = scalar_lea.vmem %s0, 2
  %v764 = vld [vmem:[%s763] sm:$0x1]
  %v765 = vperm.slane %v764, 0
  %vm766 = vcmp.eq.s32.totalorder %v69, %v765
  %vm767 = vcmp.eq.s32.totalorder %v70, %v765
  %v768 = vsel %vm766, 1, 0
  %v769 = vsel %vm767, 1, 0
  %v770 = vcvt.s32.f32 %v768
  %v771 = vcvt.s32.f32 %v769
  %772 = vmatpush.msra.mxu0 0.0
  %773 = vmatpush.msra.mxu0 0.0
  %774 = vmatpush.msra.mxu0 0.0
  %775 = vmatpush.msra.mxu0 0.0
  %776 = vmatpush.msra.mxu0 0.0
  %777 = vmatpush.msra.mxu0 0.0
  %778 = vmatpush.msra.mxu0 0.0
  %779 = vmatpush.msra.mxu0 0.0
  %780 = vmatpush.msra.mxu0 0.0
  %781 = vmatpush.msra.mxu0 0.0
  %782 = vmatpush.msra.mxu0 0.0
  %783 = vmatpush.msra.mxu0 0.0
  %784 = vmatpush.msra.mxu0 0.0
  %785 = vmatpush.msra.mxu0 0.0
  %786 = vmatpush.msra.mxu0 %v771
  %787 = vmatpush.msra.mxu0 %v770
  %788 = vmatmul.f32.gmra.mxu0 %v85
  %v789 = vpop.f32.mrf.mxu0
  %v790 = vadd.f32 0.0, %v789
  %791 = vmatmul.f32.gmra.mxu0 %v88
  %v792 = vpop.f32.mrf.mxu0
  %v793 = vadd.f32 0.0, %v792
  %794 = vmatmul.f32.gmra.mxu0 %v91
  %v795 = vpop.f32.mrf.mxu0
  %v796 = vadd.f32 0.0, %v795
  %797 = vmatmul.f32.gmra.mxu0 %v94
  %v798 = vpop.f32.mrf.mxu0
  %v799 = vadd.f32 0.0, %v798
  %800 = vmatmul.f32.gmra.mxu0 %v97
  %v801 = vpop.f32.mrf.mxu0
  %v802 = vadd.f32 0.0, %v801
  %803 = vmatmul.f32.gmra.mxu0 %v100
  %v804 = vpop.f32.mrf.mxu0
  %v805 = vadd.f32 0.0, %v804
  %806 = vmatmul.f32.gmra.mxu0 %v103
  %v807 = vpop.f32.mrf.mxu0
  %v808 = vadd.f32 0.0, %v807
  %809 = vmatmul.f32.gmra.mxu0 %v106
  %v810 = vpop.f32.mrf.mxu0
  %v811 = vadd.f32 0.0, %v810
  %812 = vmatmul.f32.gmra.mxu0 %v109
  %v813 = vpop.f32.mrf.mxu0
  %v814 = vadd.f32 0.0, %v813
  %815 = vmatmul.f32.gmra.mxu0 %v112
  %v816 = vpop.f32.mrf.mxu0
  %v817 = vadd.f32 0.0, %v816
  %818 = vmatmul.f32.gmra.mxu0 %v115
  %v819 = vpop.f32.mrf.mxu0
  %v820 = vadd.f32 0.0, %v819
  %821 = vmatmul.f32.gmra.mxu0 %v118
  %v822 = vpop.f32.mrf.mxu0
  %v823 = vadd.f32 0.0, %v822
  %824 = vdwg.mxu0
  %825 = vmatpush.msra.mxu0 0.0
  %826 = vmatpush.msra.mxu0 0.0
  %827 = vmatpush.msra.mxu0 0.0
  %828 = vmatpush.msra.mxu0 0.0
  %829 = vmatpush.msra.mxu0 0.0
  %830 = vmatpush.msra.mxu0 0.0
  %831 = vmatpush.msra.mxu0 0.0
  %832 = vmatpush.msra.mxu0 0.0
  %833 = vmatpush.msra.mxu0 0.0
  %834 = vmatpush.msra.mxu0 0.0
  %835 = vmatpush.msra.mxu0 0.0
  %836 = vmatpush.msra.mxu0 0.0
  %837 = vmatpush.msra.mxu0 %v757
  %838 = vmatpush.msra.mxu0 %v756
  %839 = vmatpush.msra.mxu0 %v755
  %840 = vmatpush.msra.mxu0 %v754
  %841 = vmatmul.f32.gmra.mxu0 %v175
  %v842 = vpop.f32.mrf.mxu0
  %v843 = vadd.f32 0.0, %v842
  %844 = vmatmul.f32.gmra.mxu0 %v178
  %v845 = vpop.f32.mrf.mxu0
  %v846 = vadd.f32 0.0, %v845
  %847 = vmatmul.f32.gmra.mxu0 %v181
  %v848 = vpop.f32.mrf.mxu0
  %v849 = vadd.f32 0.0, %v848
  %850 = vmatmul.f32.gmra.mxu0 %v184
  %v851 = vpop.f32.mrf.mxu0
  %v852 = vadd.f32 0.0, %v851
  %853 = vmatmul.f32.gmra.mxu0 %v187
  %v854 = vpop.f32.mrf.mxu0
  %v855 = vadd.f32 0.0, %v854
  %856 = vmatmul.f32.gmra.mxu0 %v190
  %v857 = vpop.f32.mrf.mxu0
  %v858 = vadd.f32 0.0, %v857
  %859 = vmatmul.f32.gmra.mxu0 %v193
  %v860 = vpop.f32.mrf.mxu0
  %v861 = vadd.f32 0.0, %v860
  %862 = vmatmul.f32.gmra.mxu0 %v196
  %v863 = vpop.f32.mrf.mxu0
  %v864 = vadd.f32 0.0, %v863
  %865 = vmatmul.f32.gmra.mxu0 %v199
  %v866 = vpop.f32.mrf.mxu0
  %v867 = vadd.f32 0.0, %v866
  %868 = vmatmul.f32.gmra.mxu0 %v202
  %v869 = vpop.f32.mrf.mxu0
  %v870 = vadd.f32 0.0, %v869
  %871 = vmatmul.f32.gmra.mxu0 %v205
  %v872 = vpop.f32.mrf.mxu0
  %v873 = vadd.f32 0.0, %v872
  %874 = vmatmul.f32.gmra.mxu0 %v208
  %v875 = vpop.f32.mrf.mxu0
  %v876 = vadd.f32 0.0, %v875
  %877 = vdwg.mxu0
  %v878 = vadd.f32 %v790, %v843
  %v879 = vadd.f32 %v793, %v846
  %v880 = vadd.f32 %v796, %v849
  %v881 = vadd.f32 %v799, %v852
  %v882 = vxor.u32 %v878, 2147483648
  %v883 = vxor.u32 %v879, 2147483648
  %v884 = vxor.u32 %v880, 2147483648
  %v885 = vxor.u32 %v881, 2147483648
  %v886 = vmul.f32 %v882, 1.442695
  %v887 = vpow.pop %v886
  %v888 = vmul.f32 %v883, 1.442695
  %v889 = vpow.pop %v888
  %v890 = vmul.f32 %v884, 1.442695
  %v891 = vpow.pop %v890
  %v892 = vmul.f32 %v885, 1.442695
  %v893 = vpow.pop %v892
  %v894 = vadd.f32 %v887, 1.0
  %v895 = vadd.f32 %v889, 1.0
  %v896 = vadd.f32 %v891, 1.0
  %v897 = vadd.f32 %v893, 1.0
  %v898 = vrcp.pop %v894
  %v899 = vmul.f32 %v894, %v898
  %v900 = vsub.f32 1.0, %v899
  %v901 = vmul.f32 %v898, %v900
  %v902 = vadd.f32 %v898, %v901
  %vm903 = vweird.f32 %v894
  %vm904 = vweird.f32 %v898
  %vm905 = vmor %vm903, %vm904
  %v906 = vsel %vm905, %v898, %v902
  %v907 = vand.u32 2147483647, %v894
  %vm908 = vcmp.eq.f32.partialorder %v907, 8.507059e+37
  %v909 = vand.u32 %v894, 2147483648
  %v910 = vor.u32 1.1754944e-38, %v909
  %v911 = vsel %vm908, %v910, %v906
  %v912 = vmul.f32 1.0, %v911
  %v913 = vrcp.pop %v895
  %v914 = vmul.f32 %v895, %v913
  %v915 = vsub.f32 1.0, %v914
  %v916 = vmul.f32 %v913, %v915
  %v917 = vadd.f32 %v913, %v916
  %vm918 = vweird.f32 %v895
  %vm919 = vweird.f32 %v913
  %vm920 = vmor %vm918, %vm919
  %v921 = vsel %vm920, %v913, %v917
  %v922 = vand.u32 2147483647, %v895
  %vm923 = vcmp.eq.f32.partialorder %v922, 8.507059e+37
  %v924 = vand.u32 %v895, 2147483648
  %v925 = vor.u32 1.1754944e-38, %v924
  %v926 = vsel %vm923, %v925, %v921
  %v927 = vmul.f32 1.0, %v926
  %v928 = vrcp.pop %v896
  %v929 = vmul.f32 %v896, %v928
  %v930 = vsub.f32 1.0, %v929
  %v931 = vmul.f32 %v928, %v930
  %v932 = vadd.f32 %v928, %v931
  %vm933 = vweird.f32 %v896
  %vm934 = vweird.f32 %v928
  %vm935 = vmor %vm933, %vm934
  %v936 = vsel %vm935, %v928, %v932
  %v937 = vand.u32 2147483647, %v896
  %vm938 = vcmp.eq.f32.partialorder %v937, 8.507059e+37
  %v939 = vand.u32 %v896, 2147483648
  %v940 = vor.u32 1.1754944e-38, %v939
  %v941 = vsel %vm938, %v940, %v936
  %v942 = vmul.f32 1.0, %v941
  %v943 = vrcp.pop %v897
  %v944 = vmul.f32 %v897, %v943
  %v945 = vsub.f32 1.0, %v944
  %v946 = vmul.f32 %v943, %v945
  %v947 = vadd.f32 %v943, %v946
  %vm948 = vweird.f32 %v897
  %vm949 = vweird.f32 %v943
  %vm950 = vmor %vm948, %vm949
  %v951 = vsel %vm950, %v943, %v947
  %v952 = vand.u32 2147483647, %v897
  %vm953 = vcmp.eq.f32.partialorder %v952, 8.507059e+37
  %v954 = vand.u32 %v897, 2147483648
  %v955 = vor.u32 1.1754944e-38, %v954
  %v956 = vsel %vm953, %v955, %v951
  %v957 = vmul.f32 1.0, %v956
  %v958 = vadd.f32 %v802, %v855
  %v959 = vadd.f32 %v805, %v858
  %v960 = vadd.f32 %v808, %v861
  %v961 = vadd.f32 %v811, %v864
  %v962 = vxor.u32 %v958, 2147483648
  %v963 = vxor.u32 %v959, 2147483648
  %v964 = vxor.u32 %v960, 2147483648
  %v965 = vxor.u32 %v961, 2147483648
  %v966 = vmul.f32 %v962, 1.442695
  %v967 = vpow.pop %v966
  %v968 = vmul.f32 %v963, 1.442695
  %v969 = vpow.pop %v968
  %v970 = vmul.f32 %v964, 1.442695
  %v971 = vpow.pop %v970
  %v972 = vmul.f32 %v965, 1.442695
  %v973 = vpow.pop %v972
  %v974 = vadd.f32 %v967, 1.0
  %v975 = vadd.f32 %v969, 1.0
  %v976 = vadd.f32 %v971, 1.0
  %v977 = vadd.f32 %v973, 1.0
  %v978 = vrcp.pop %v974
  %v979 = vmul.f32 %v974, %v978
  %v980 = vsub.f32 1.0, %v979
  %v981 = vmul.f32 %v978, %v980
  %v982 = vadd.f32 %v978, %v981
  %vm983 = vweird.f32 %v974
  %vm984 = vweird.f32 %v978
  %vm985 = vmor %vm983, %vm984
  %v986 = vsel %vm985, %v978, %v982
  %v987 = vand.u32 2147483647, %v974
  %vm988 = vcmp.eq.f32.partialorder %v987, 8.507059e+37
  %v989 = vand.u32 %v974, 2147483648
  %v990 = vor.u32 1.1754944e-38, %v989
  %v991 = vsel %vm988, %v990, %v986
  %v992 = vmul.f32 1.0, %v991
  %v993 = vrcp.pop %v975
  %v994 = vmul.f32 %v975, %v993
  %v995 = vsub.f32 1.0, %v994
  %v996 = vmul.f32 %v993, %v995
  %v997 = vadd.f32 %v993, %v996
  %vm998 = vweird.f32 %v975
  %vm999 = vweird.f32 %v993
  %vm1000 = vmor %vm998, %vm999
  %v1001 = vsel %vm1000, %v993, %v997
  %v1002 = vand.u32 2147483647, %v975
  %vm1003 = vcmp.eq.f32.partialorder %v1002, 8.507059e+37
  %v1004 = vand.u32 %v975, 2147483648
  %v1005 = vor.u32 1.1754944e-38, %v1004
  %v1006 = vsel %vm1003, %v1005, %v1001
  %v1007 = vmul.f32 1.0, %v1006
  %v1008 = vrcp.pop %v976
  %v1009 = vmul.f32 %v976, %v1008
  %v1010 = vsub.f32 1.0, %v1009
  %v1011 = vmul.f32 %v1008, %v1010
  %v1012 = vadd.f32 %v1008, %v1011
  %vm1013 = vweird.f32 %v976
  %vm1014 = vweird.f32 %v1008
  %vm1015 = vmor %vm1013, %vm1014
  %v1016 = vsel %vm1015, %v1008, %v1012
  %v1017 = vand.u32 2147483647, %v976
  %vm1018 = vcmp.eq.f32.partialorder %v1017, 8.507059e+37
  %v1019 = vand.u32 %v976, 2147483648
  %v1020 = vor.u32 1.1754944e-38, %v1019
  %v1021 = vsel %vm1018, %v1020, %v1016
  %v1022 = vmul.f32 1.0, %v1021
  %v1023 = vrcp.pop %v977
  %v1024 = vmul.f32 %v977, %v1023
  %v1025 = vsub.f32 1.0, %v1024
  %v1026 = vmul.f32 %v1023, %v1025
  %v1027 = vadd.f32 %v1023, %v1026
  %vm1028 = vweird.f32 %v977
  %vm1029 = vweird.f32 %v1023
  %vm1030 = vmor %vm1028, %vm1029
  %v1031 = vsel %vm1030, %v1023, %v1027
  %v1032 = vand.u32 2147483647, %v977
  %vm1033 = vcmp.eq.f32.partialorder %v1032, 8.507059e+37
  %v1034 = vand.u32 %v977, 2147483648
  %v1035 = vor.u32 1.1754944e-38, %v1034
  %v1036 = vsel %vm1033, %v1035, %v1031
  %v1037 = vmul.f32 1.0, %v1036
  %v1038 = vadd.f32 %v867, %v51
  %v1039 = vadd.f32 %v870, %v56
  %v1040 = vadd.f32 %v873, %v61
  %v1041 = vadd.f32 %v876, %v66
  %v1042 = vmul.f32 %v912, %v1038
  %v1043 = vmul.f32 %v927, %v1039
  %v1044 = vmul.f32 %v942, %v1040
  %v1045 = vmul.f32 %v957, %v1041
  %v1046 = vadd.f32 %v814, %v1042
  %v1047 = vadd.f32 %v817, %v1043
  %v1048 = vadd.f32 %v820, %v1044
  %v1049 = vadd.f32 %v823, %v1045
  %v1050 = vtanh.pop %v1046
  %v1051 = vtanh.pop %v1047
  %v1052 = vtanh.pop %v1048
  %v1053 = vtanh.pop %v1049
  %v1054 = vsub.f32 %v754, %v1050
  %v1055 = vsub.f32 %v755, %v1051
  %v1056 = vsub.f32 %v756, %v1052
  %v1057 = vsub.f32 %v757, %v1053
  %v1058 = vmul.f32 %v992, %v1054
  %v1059 = vmul.f32 %v1007, %v1055
  %v1060 = vmul.f32 %v1022, %v1056
  %v1061 = vmul.f32 %v1037, %v1057
  %v1062 = vadd.f32 %v1050, %v1058
  %v1063 = vadd.f32 %v1051, %v1059
  %v1064 = vadd.f32 %v1052, %v1060
  %v1065 = vadd.f32 %v1053, %v1061
  %s1066 = scalar_lea.vmem %s5, 64
  %1067 = vst [vmem:[%s1066] sm:$0xff] %v1062
  %1068 = vst [vmem:[%s1066 + $0x8] sm:$0xff] %v1063
  %1069 = vst [vmem:[%s1066 + $0x10] sm:$0xff] %v1064
  %1070 = vst [vmem:[%s1066 + $0x18] sm:$0xff] %v1065
  %s1071 = scalar_lea.vmem %s0, 3
  %v1072 = vld [vmem:[%s1071] sm:$0x1]
  %v1073 = vperm.slane %v1072, 0
  %vm1074 = vcmp.eq.s32.totalorder %v69, %v1073
  %vm1075 = vcmp.eq.s32.totalorder %v70, %v1073
  %v1076 = vsel %vm1074, 1, 0
  %v1077 = vsel %vm1075, 1, 0
  %v1078 = vcvt.s32.f32 %v1076
  %v1079 = vcvt.s32.f32 %v1077
  %1080 = vmatpush.msra.mxu0 0.0
  %1081 = vmatpush.msra.mxu0 0.0
  %1082 = vmatpush.msra.mxu0 0.0
  %1083 = vmatpush.msra.mxu0 0.0
  %1084 = vmatpush.msra.mxu0 0.0
  %1085 = vmatpush.msra.mxu0 0.0
  %1086 = vmatpush.msra.mxu0 0.0
  %1087 = vmatpush.msra.mxu0 0.0
  %1088 = vmatpush.msra.mxu0 0.0
  %1089 = vmatpush.msra.mxu0 0.0
  %1090 = vmatpush.msra.mxu0 0.0
  %1091 = vmatpush.msra.mxu0 0.0
  %1092 = vmatpush.msra.mxu0 0.0
  %1093 = vmatpush.msra.mxu0 0.0
  %1094 = vmatpush.msra.mxu0 %v1079
  %1095 = vmatpush.msra.mxu0 %v1078
  %1096 = vmatmul.f32.gmra.mxu0 %v85
  %v1097 = vpop.f32.mrf.mxu0
  %v1098 = vadd.f32 0.0, %v1097
  %1099 = vmatmul.f32.gmra.mxu0 %v88
  %v1100 = vpop.f32.mrf.mxu0
  %v1101 = vadd.f32 0.0, %v1100
  %1102 = vmatmul.f32.gmra.mxu0 %v91
  %v1103 = vpop.f32.mrf.mxu0
  %v1104 = vadd.f32 0.0, %v1103
  %1105 = vmatmul.f32.gmra.mxu0 %v94
  %v1106 = vpop.f32.mrf.mxu0
  %v1107 = vadd.f32 0.0, %v1106
  %1108 = vmatmul.f32.gmra.mxu0 %v97
  %v1109 = vpop.f32.mrf.mxu0
  %v1110 = vadd.f32 0.0, %v1109
  %1111 = vmatmul.f32.gmra.mxu0 %v100
  %v1112 = vpop.f32.mrf.mxu0
  %v1113 = vadd.f32 0.0, %v1112
  %1114 = vmatmul.f32.gmra.mxu0 %v103
  %v1115 = vpop.f32.mrf.mxu0
  %v1116 = vadd.f32 0.0, %v1115
  %1117 = vmatmul.f32.gmra.mxu0 %v106
  %v1118 = vpop.f32.mrf.mxu0
  %v1119 = vadd.f32 0.0, %v1118
  %1120 = vmatmul.f32.gmra.mxu0 %v109
  %v1121 = vpop.f32.mrf.mxu0
  %v1122 = vadd.f32 0.0, %v1121
  %1123 = vmatmul.f32.gmra.mxu0 %v112
  %v1124 = vpop.f32.mrf.mxu0
  %v1125 = vadd.f32 0.0, %v1124
  %1126 = vmatmul.f32.gmra.mxu0 %v115
  %v1127 = vpop.f32.mrf.mxu0
  %v1128 = vadd.f32 0.0, %v1127
  %1129 = vmatmul.f32.gmra.mxu0 %v118
  %v1130 = vpop.f32.mrf.mxu0
  %v1131 = vadd.f32 0.0, %v1130
  %1132 = vdwg.mxu0
  %1133 = vmatpush.msra.mxu0 0.0
  %1134 = vmatpush.msra.mxu0 0.0
  %1135 = vmatpush.msra.mxu0 0.0
  %1136 = vmatpush.msra.mxu0 0.0
  %1137 = vmatpush.msra.mxu0 0.0
  %1138 = vmatpush.msra.mxu0 0.0
  %1139 = vmatpush.msra.mxu0 0.0
  %1140 = vmatpush.msra.mxu0 0.0
  %1141 = vmatpush.msra.mxu0 0.0
  %1142 = vmatpush.msra.mxu0 0.0
  %1143 = vmatpush.msra.mxu0 0.0
  %1144 = vmatpush.msra.mxu0 0.0
  %1145 = vmatpush.msra.mxu0 %v1065
  %1146 = vmatpush.msra.mxu0 %v1064
  %1147 = vmatpush.msra.mxu0 %v1063
  %1148 = vmatpush.msra.mxu0 %v1062
  %1149 = vmatmul.f32.gmra.mxu0 %v175
  %v1150 = vpop.f32.mrf.mxu0
  %v1151 = vadd.f32 0.0, %v1150
  %1152 = vmatmul.f32.gmra.mxu0 %v178
  %v1153 = vpop.f32.mrf.mxu0
  %v1154 = vadd.f32 0.0, %v1153
  %1155 = vmatmul.f32.gmra.mxu0 %v181
  %v1156 = vpop.f32.mrf.mxu0
  %v1157 = vadd.f32 0.0, %v1156
  %1158 = vmatmul.f32.gmra.mxu0 %v184
  %v1159 = vpop.f32.mrf.mxu0
  %v1160 = vadd.f32 0.0, %v1159
  %1161 = vmatmul.f32.gmra.mxu0 %v187
  %v1162 = vpop.f32.mrf.mxu0
  %v1163 = vadd.f32 0.0, %v1162
  %1164 = vmatmul.f32.gmra.mxu0 %v190
  %v1165 = vpop.f32.mrf.mxu0
  %v1166 = vadd.f32 0.0, %v1165
  %1167 = vmatmul.f32.gmra.mxu0 %v193
  %v1168 = vpop.f32.mrf.mxu0
  %v1169 = vadd.f32 0.0, %v1168
  %1170 = vmatmul.f32.gmra.mxu0 %v196
  %v1171 = vpop.f32.mrf.mxu0
  %v1172 = vadd.f32 0.0, %v1171
  %1173 = vmatmul.f32.gmra.mxu0 %v199
  %v1174 = vpop.f32.mrf.mxu0
  %v1175 = vadd.f32 0.0, %v1174
  %1176 = vmatmul.f32.gmra.mxu0 %v202
  %v1177 = vpop.f32.mrf.mxu0
  %v1178 = vadd.f32 0.0, %v1177
  %1179 = vmatmul.f32.gmra.mxu0 %v205
  %v1180 = vpop.f32.mrf.mxu0
  %v1181 = vadd.f32 0.0, %v1180
  %1182 = vmatmul.f32.gmra.mxu0 %v208
  %v1183 = vpop.f32.mrf.mxu0
  %v1184 = vadd.f32 0.0, %v1183
  %1185 = vdwg.mxu0
  %v1186 = vadd.f32 %v1098, %v1151
  %v1187 = vadd.f32 %v1101, %v1154
  %v1188 = vadd.f32 %v1104, %v1157
  %v1189 = vadd.f32 %v1107, %v1160
  %v1190 = vxor.u32 %v1186, 2147483648
  %v1191 = vxor.u32 %v1187, 2147483648
  %v1192 = vxor.u32 %v1188, 2147483648
  %v1193 = vxor.u32 %v1189, 2147483648
  %v1194 = vmul.f32 %v1190, 1.442695
  %v1195 = vpow.pop %v1194
  %v1196 = vmul.f32 %v1191, 1.442695
  %v1197 = vpow.pop %v1196
  %v1198 = vmul.f32 %v1192, 1.442695
  %v1199 = vpow.pop %v1198
  %v1200 = vmul.f32 %v1193, 1.442695
  %v1201 = vpow.pop %v1200
  %v1202 = vadd.f32 %v1195, 1.0
  %v1203 = vadd.f32 %v1197, 1.0
  %v1204 = vadd.f32 %v1199, 1.0
  %v1205 = vadd.f32 %v1201, 1.0
  %v1206 = vrcp.pop %v1202
  %v1207 = vmul.f32 %v1202, %v1206
  %v1208 = vsub.f32 1.0, %v1207
  %v1209 = vmul.f32 %v1206, %v1208
  %v1210 = vadd.f32 %v1206, %v1209
  %vm1211 = vweird.f32 %v1202
  %vm1212 = vweird.f32 %v1206
  %vm1213 = vmor %vm1211, %vm1212
  %v1214 = vsel %vm1213, %v1206, %v1210
  %v1215 = vand.u32 2147483647, %v1202
  %vm1216 = vcmp.eq.f32.partialorder %v1215, 8.507059e+37
  %v1217 = vand.u32 %v1202, 2147483648
  %v1218 = vor.u32 1.1754944e-38, %v1217
  %v1219 = vsel %vm1216, %v1218, %v1214
  %v1220 = vmul.f32 1.0, %v1219
  %v1221 = vrcp.pop %v1203
  %v1222 = vmul.f32 %v1203, %v1221
  %v1223 = vsub.f32 1.0, %v1222
  %v1224 = vmul.f32 %v1221, %v1223
  %v1225 = vadd.f32 %v1221, %v1224
  %vm1226 = vweird.f32 %v1203
  %vm1227 = vweird.f32 %v1221
  %vm1228 = vmor %vm1226, %vm1227
  %v1229 = vsel %vm1228, %v1221, %v1225
  %v1230 = vand.u32 2147483647, %v1203
  %vm1231 = vcmp.eq.f32.partialorder %v1230, 8.507059e+37
  %v1232 = vand.u32 %v1203, 2147483648
  %v1233 = vor.u32 1.1754944e-38, %v1232
  %v1234 = vsel %vm1231, %v1233, %v1229
  %v1235 = vmul.f32 1.0, %v1234
  %v1236 = vrcp.pop %v1204
  %v1237 = vmul.f32 %v1204, %v1236
  %v1238 = vsub.f32 1.0, %v1237
  %v1239 = vmul.f32 %v1236, %v1238
  %v1240 = vadd.f32 %v1236, %v1239
  %vm1241 = vweird.f32 %v1204
  %vm1242 = vweird.f32 %v1236
  %vm1243 = vmor %vm1241, %vm1242
  %v1244 = vsel %vm1243, %v1236, %v1240
  %v1245 = vand.u32 2147483647, %v1204
  %vm1246 = vcmp.eq.f32.partialorder %v1245, 8.507059e+37
  %v1247 = vand.u32 %v1204, 2147483648
  %v1248 = vor.u32 1.1754944e-38, %v1247
  %v1249 = vsel %vm1246, %v1248, %v1244
  %v1250 = vmul.f32 1.0, %v1249
  %v1251 = vrcp.pop %v1205
  %v1252 = vmul.f32 %v1205, %v1251
  %v1253 = vsub.f32 1.0, %v1252
  %v1254 = vmul.f32 %v1251, %v1253
  %v1255 = vadd.f32 %v1251, %v1254
  %vm1256 = vweird.f32 %v1205
  %vm1257 = vweird.f32 %v1251
  %vm1258 = vmor %vm1256, %vm1257
  %v1259 = vsel %vm1258, %v1251, %v1255
  %v1260 = vand.u32 2147483647, %v1205
  %vm1261 = vcmp.eq.f32.partialorder %v1260, 8.507059e+37
  %v1262 = vand.u32 %v1205, 2147483648
  %v1263 = vor.u32 1.1754944e-38, %v1262
  %v1264 = vsel %vm1261, %v1263, %v1259
  %v1265 = vmul.f32 1.0, %v1264
  %v1266 = vadd.f32 %v1110, %v1163
  %v1267 = vadd.f32 %v1113, %v1166
  %v1268 = vadd.f32 %v1116, %v1169
  %v1269 = vadd.f32 %v1119, %v1172
  %v1270 = vxor.u32 %v1266, 2147483648
  %v1271 = vxor.u32 %v1267, 2147483648
  %v1272 = vxor.u32 %v1268, 2147483648
  %v1273 = vxor.u32 %v1269, 2147483648
  %v1274 = vmul.f32 %v1270, 1.442695
  %v1275 = vpow.pop %v1274
  %v1276 = vmul.f32 %v1271, 1.442695
  %v1277 = vpow.pop %v1276
  %v1278 = vmul.f32 %v1272, 1.442695
  %v1279 = vpow.pop %v1278
  %v1280 = vmul.f32 %v1273, 1.442695
  %v1281 = vpow.pop %v1280
  %v1282 = vadd.f32 %v1275, 1.0
  %v1283 = vadd.f32 %v1277, 1.0
  %v1284 = vadd.f32 %v1279, 1.0
  %v1285 = vadd.f32 %v1281, 1.0
  %v1286 = vrcp.pop %v1282
  %v1287 = vmul.f32 %v1282, %v1286
  %v1288 = vsub.f32 1.0, %v1287
  %v1289 = vmul.f32 %v1286, %v1288
  %v1290 = vadd.f32 %v1286, %v1289
  %vm1291 = vweird.f32 %v1282
  %vm1292 = vweird.f32 %v1286
  %vm1293 = vmor %vm1291, %vm1292
  %v1294 = vsel %vm1293, %v1286, %v1290
  %v1295 = vand.u32 2147483647, %v1282
  %vm1296 = vcmp.eq.f32.partialorder %v1295, 8.507059e+37
  %v1297 = vand.u32 %v1282, 2147483648
  %v1298 = vor.u32 1.1754944e-38, %v1297
  %v1299 = vsel %vm1296, %v1298, %v1294
  %v1300 = vmul.f32 1.0, %v1299
  %v1301 = vrcp.pop %v1283
  %v1302 = vmul.f32 %v1283, %v1301
  %v1303 = vsub.f32 1.0, %v1302
  %v1304 = vmul.f32 %v1301, %v1303
  %v1305 = vadd.f32 %v1301, %v1304
  %vm1306 = vweird.f32 %v1283
  %vm1307 = vweird.f32 %v1301
  %vm1308 = vmor %vm1306, %vm1307
  %v1309 = vsel %vm1308, %v1301, %v1305
  %v1310 = vand.u32 2147483647, %v1283
  %vm1311 = vcmp.eq.f32.partialorder %v1310, 8.507059e+37
  %v1312 = vand.u32 %v1283, 2147483648
  %v1313 = vor.u32 1.1754944e-38, %v1312
  %v1314 = vsel %vm1311, %v1313, %v1309
  %v1315 = vmul.f32 1.0, %v1314
  %v1316 = vrcp.pop %v1284
  %v1317 = vmul.f32 %v1284, %v1316
  %v1318 = vsub.f32 1.0, %v1317
  %v1319 = vmul.f32 %v1316, %v1318
  %v1320 = vadd.f32 %v1316, %v1319
  %vm1321 = vweird.f32 %v1284
  %vm1322 = vweird.f32 %v1316
  %vm1323 = vmor %vm1321, %vm1322
  %v1324 = vsel %vm1323, %v1316, %v1320
  %v1325 = vand.u32 2147483647, %v1284
  %vm1326 = vcmp.eq.f32.partialorder %v1325, 8.507059e+37
  %v1327 = vand.u32 %v1284, 2147483648
  %v1328 = vor.u32 1.1754944e-38, %v1327
  %v1329 = vsel %vm1326, %v1328, %v1324
  %v1330 = vmul.f32 1.0, %v1329
  %v1331 = vrcp.pop %v1285
  %v1332 = vmul.f32 %v1285, %v1331
  %v1333 = vsub.f32 1.0, %v1332
  %v1334 = vmul.f32 %v1331, %v1333
  %v1335 = vadd.f32 %v1331, %v1334
  %vm1336 = vweird.f32 %v1285
  %vm1337 = vweird.f32 %v1331
  %vm1338 = vmor %vm1336, %vm1337
  %v1339 = vsel %vm1338, %v1331, %v1335
  %v1340 = vand.u32 2147483647, %v1285
  %vm1341 = vcmp.eq.f32.partialorder %v1340, 8.507059e+37
  %v1342 = vand.u32 %v1285, 2147483648
  %v1343 = vor.u32 1.1754944e-38, %v1342
  %v1344 = vsel %vm1341, %v1343, %v1339
  %v1345 = vmul.f32 1.0, %v1344
  %v1346 = vadd.f32 %v1175, %v51
  %v1347 = vadd.f32 %v1178, %v56
  %v1348 = vadd.f32 %v1181, %v61
  %v1349 = vadd.f32 %v1184, %v66
  %v1350 = vmul.f32 %v1220, %v1346
  %v1351 = vmul.f32 %v1235, %v1347
  %v1352 = vmul.f32 %v1250, %v1348
  %v1353 = vmul.f32 %v1265, %v1349
  %v1354 = vadd.f32 %v1122, %v1350
  %v1355 = vadd.f32 %v1125, %v1351
  %v1356 = vadd.f32 %v1128, %v1352
  %v1357 = vadd.f32 %v1131, %v1353
  %v1358 = vtanh.pop %v1354
  %v1359 = vtanh.pop %v1355
  %v1360 = vtanh.pop %v1356
  %v1361 = vtanh.pop %v1357
  %v1362 = vsub.f32 %v1062, %v1358
  %v1363 = vsub.f32 %v1063, %v1359
  %v1364 = vsub.f32 %v1064, %v1360
  %v1365 = vsub.f32 %v1065, %v1361
  %v1366 = vmul.f32 %v1300, %v1362
  %v1367 = vmul.f32 %v1315, %v1363
  %v1368 = vmul.f32 %v1330, %v1364
  %v1369 = vmul.f32 %v1345, %v1365
  %v1370 = vadd.f32 %v1358, %v1366
  %v1371 = vadd.f32 %v1359, %v1367
  %v1372 = vadd.f32 %v1360, %v1368
  %v1373 = vadd.f32 %v1361, %v1369
  %s1374 = scalar_lea.vmem %s5, 96
  %1375 = vst [vmem:[%s1374] sm:$0xff] %v1370
  %1376 = vst [vmem:[%s1374 + $0x8] sm:$0xff] %v1371
  %1377 = vst [vmem:[%s1374 + $0x10] sm:$0xff] %v1372
  %1378 = vst [vmem:[%s1374 + $0x18] sm:$0xff] %v1373
  %s1379 = scalar_lea.vmem %s0, 4
  %v1380 = vld [vmem:[%s1379] sm:$0x1]
  %v1381 = vperm.slane %v1380, 0
  %vm1382 = vcmp.eq.s32.totalorder %v69, %v1381
  %vm1383 = vcmp.eq.s32.totalorder %v70, %v1381
  %v1384 = vsel %vm1382, 1, 0
  %v1385 = vsel %vm1383, 1, 0
  %v1386 = vcvt.s32.f32 %v1384
  %v1387 = vcvt.s32.f32 %v1385
  %1388 = vmatpush.msra.mxu0 0.0
  %1389 = vmatpush.msra.mxu0 0.0
  %1390 = vmatpush.msra.mxu0 0.0
  %1391 = vmatpush.msra.mxu0 0.0
  %1392 = vmatpush.msra.mxu0 0.0
  %1393 = vmatpush.msra.mxu0 0.0
  %1394 = vmatpush.msra.mxu0 0.0
  %1395 = vmatpush.msra.mxu0 0.0
  %1396 = vmatpush.msra.mxu0 0.0
  %1397 = vmatpush.msra.mxu0 0.0
  %1398 = vmatpush.msra.mxu0 0.0
  %1399 = vmatpush.msra.mxu0 0.0
  %1400 = vmatpush.msra.mxu0 0.0
  %1401 = vmatpush.msra.mxu0 0.0
  %1402 = vmatpush.msra.mxu0 %v1387
  %1403 = vmatpush.msra.mxu0 %v1386
  %1404 = vmatmul.f32.gmra.mxu0 %v85
  %v1405 = vpop.f32.mrf.mxu0
  %v1406 = vadd.f32 0.0, %v1405
  %1407 = vmatmul.f32.gmra.mxu0 %v88
  %v1408 = vpop.f32.mrf.mxu0
  %v1409 = vadd.f32 0.0, %v1408
  %1410 = vmatmul.f32.gmra.mxu0 %v91
  %v1411 = vpop.f32.mrf.mxu0
  %v1412 = vadd.f32 0.0, %v1411
  %1413 = vmatmul.f32.gmra.mxu0 %v94
  %v1414 = vpop.f32.mrf.mxu0
  %v1415 = vadd.f32 0.0, %v1414
  %1416 = vmatmul.f32.gmra.mxu0 %v97
  %v1417 = vpop.f32.mrf.mxu0
  %v1418 = vadd.f32 0.0, %v1417
  %1419 = vmatmul.f32.gmra.mxu0 %v100
  %v1420 = vpop.f32.mrf.mxu0
  %v1421 = vadd.f32 0.0, %v1420
  %1422 = vmatmul.f32.gmra.mxu0 %v103
  %v1423 = vpop.f32.mrf.mxu0
  %v1424 = vadd.f32 0.0, %v1423
  %1425 = vmatmul.f32.gmra.mxu0 %v106
  %v1426 = vpop.f32.mrf.mxu0
  %v1427 = vadd.f32 0.0, %v1426
  %1428 = vmatmul.f32.gmra.mxu0 %v109
  %v1429 = vpop.f32.mrf.mxu0
  %v1430 = vadd.f32 0.0, %v1429
  %1431 = vmatmul.f32.gmra.mxu0 %v112
  %v1432 = vpop.f32.mrf.mxu0
  %v1433 = vadd.f32 0.0, %v1432
  %1434 = vmatmul.f32.gmra.mxu0 %v115
  %v1435 = vpop.f32.mrf.mxu0
  %v1436 = vadd.f32 0.0, %v1435
  %1437 = vmatmul.f32.gmra.mxu0 %v118
  %v1438 = vpop.f32.mrf.mxu0
  %v1439 = vadd.f32 0.0, %v1438
  %1440 = vdwg.mxu0
  %1441 = vmatpush.msra.mxu0 0.0
  %1442 = vmatpush.msra.mxu0 0.0
  %1443 = vmatpush.msra.mxu0 0.0
  %1444 = vmatpush.msra.mxu0 0.0
  %1445 = vmatpush.msra.mxu0 0.0
  %1446 = vmatpush.msra.mxu0 0.0
  %1447 = vmatpush.msra.mxu0 0.0
  %1448 = vmatpush.msra.mxu0 0.0
  %1449 = vmatpush.msra.mxu0 0.0
  %1450 = vmatpush.msra.mxu0 0.0
  %1451 = vmatpush.msra.mxu0 0.0
  %1452 = vmatpush.msra.mxu0 0.0
  %1453 = vmatpush.msra.mxu0 %v1373
  %1454 = vmatpush.msra.mxu0 %v1372
  %1455 = vmatpush.msra.mxu0 %v1371
  %1456 = vmatpush.msra.mxu0 %v1370
  %1457 = vmatmul.f32.gmra.mxu0 %v175
  %v1458 = vpop.f32.mrf.mxu0
  %v1459 = vadd.f32 0.0, %v1458
  %1460 = vmatmul.f32.gmra.mxu0 %v178
  %v1461 = vpop.f32.mrf.mxu0
  %v1462 = vadd.f32 0.0, %v1461
  %1463 = vmatmul.f32.gmra.mxu0 %v181
  %v1464 = vpop.f32.mrf.mxu0
  %v1465 = vadd.f32 0.0, %v1464
  %1466 = vmatmul.f32.gmra.mxu0 %v184
  %v1467 = vpop.f32.mrf.mxu0
  %v1468 = vadd.f32 0.0, %v1467
  %1469 = vmatmul.f32.gmra.mxu0 %v187
  %v1470 = vpop.f32.mrf.mxu0
  %v1471 = vadd.f32 0.0, %v1470
  %1472 = vmatmul.f32.gmra.mxu0 %v190
  %v1473 = vpop.f32.mrf.mxu0
  %v1474 = vadd.f32 0.0, %v1473
  %1475 = vmatmul.f32.gmra.mxu0 %v193
  %v1476 = vpop.f32.mrf.mxu0
  %v1477 = vadd.f32 0.0, %v1476
  %1478 = vmatmul.f32.gmra.mxu0 %v196
  %v1479 = vpop.f32.mrf.mxu0
  %v1480 = vadd.f32 0.0, %v1479
  %1481 = vmatmul.f32.gmra.mxu0 %v199
  %v1482 = vpop.f32.mrf.mxu0
  %v1483 = vadd.f32 0.0, %v1482
  %1484 = vmatmul.f32.gmra.mxu0 %v202
  %v1485 = vpop.f32.mrf.mxu0
  %v1486 = vadd.f32 0.0, %v1485
  %1487 = vmatmul.f32.gmra.mxu0 %v205
  %v1488 = vpop.f32.mrf.mxu0
  %v1489 = vadd.f32 0.0, %v1488
  %1490 = vmatmul.f32.gmra.mxu0 %v208
  %v1491 = vpop.f32.mrf.mxu0
  %v1492 = vadd.f32 0.0, %v1491
  %1493 = vdwg.mxu0
  %v1494 = vadd.f32 %v1406, %v1459
  %v1495 = vadd.f32 %v1409, %v1462
  %v1496 = vadd.f32 %v1412, %v1465
  %v1497 = vadd.f32 %v1415, %v1468
  %v1498 = vxor.u32 %v1494, 2147483648
  %v1499 = vxor.u32 %v1495, 2147483648
  %v1500 = vxor.u32 %v1496, 2147483648
  %v1501 = vxor.u32 %v1497, 2147483648
  %v1502 = vmul.f32 %v1498, 1.442695
  %v1503 = vpow.pop %v1502
  %v1504 = vmul.f32 %v1499, 1.442695
  %v1505 = vpow.pop %v1504
  %v1506 = vmul.f32 %v1500, 1.442695
  %v1507 = vpow.pop %v1506
  %v1508 = vmul.f32 %v1501, 1.442695
  %v1509 = vpow.pop %v1508
  %v1510 = vadd.f32 %v1503, 1.0
  %v1511 = vadd.f32 %v1505, 1.0
  %v1512 = vadd.f32 %v1507, 1.0
  %v1513 = vadd.f32 %v1509, 1.0
  %v1514 = vrcp.pop %v1510
  %v1515 = vmul.f32 %v1510, %v1514
  %v1516 = vsub.f32 1.0, %v1515
  %v1517 = vmul.f32 %v1514, %v1516
  %v1518 = vadd.f32 %v1514, %v1517
  %vm1519 = vweird.f32 %v1510
  %vm1520 = vweird.f32 %v1514
  %vm1521 = vmor %vm1519, %vm1520
  %v1522 = vsel %vm1521, %v1514, %v1518
  %v1523 = vand.u32 2147483647, %v1510
  %vm1524 = vcmp.eq.f32.partialorder %v1523, 8.507059e+37
  %v1525 = vand.u32 %v1510, 2147483648
  %v1526 = vor.u32 1.1754944e-38, %v1525
  %v1527 = vsel %vm1524, %v1526, %v1522
  %v1528 = vmul.f32 1.0, %v1527
  %v1529 = vrcp.pop %v1511
  %v1530 = vmul.f32 %v1511, %v1529
  %v1531 = vsub.f32 1.0, %v1530
  %v1532 = vmul.f32 %v1529, %v1531
  %v1533 = vadd.f32 %v1529, %v1532
  %vm1534 = vweird.f32 %v1511
  %vm1535 = vweird.f32 %v1529
  %vm1536 = vmor %vm1534, %vm1535
  %v1537 = vsel %vm1536, %v1529, %v1533
  %v1538 = vand.u32 2147483647, %v1511
  %vm1539 = vcmp.eq.f32.partialorder %v1538, 8.507059e+37
  %v1540 = vand.u32 %v1511, 2147483648
  %v1541 = vor.u32 1.1754944e-38, %v1540
  %v1542 = vsel %vm1539, %v1541, %v1537
  %v1543 = vmul.f32 1.0, %v1542
  %v1544 = vrcp.pop %v1512
  %v1545 = vmul.f32 %v1512, %v1544
  %v1546 = vsub.f32 1.0, %v1545
  %v1547 = vmul.f32 %v1544, %v1546
  %v1548 = vadd.f32 %v1544, %v1547
  %vm1549 = vweird.f32 %v1512
  %vm1550 = vweird.f32 %v1544
  %vm1551 = vmor %vm1549, %vm1550
  %v1552 = vsel %vm1551, %v1544, %v1548
  %v1553 = vand.u32 2147483647, %v1512
  %vm1554 = vcmp.eq.f32.partialorder %v1553, 8.507059e+37
  %v1555 = vand.u32 %v1512, 2147483648
  %v1556 = vor.u32 1.1754944e-38, %v1555
  %v1557 = vsel %vm1554, %v1556, %v1552
  %v1558 = vmul.f32 1.0, %v1557
  %v1559 = vrcp.pop %v1513
  %v1560 = vmul.f32 %v1513, %v1559
  %v1561 = vsub.f32 1.0, %v1560
  %v1562 = vmul.f32 %v1559, %v1561
  %v1563 = vadd.f32 %v1559, %v1562
  %vm1564 = vweird.f32 %v1513
  %vm1565 = vweird.f32 %v1559
  %vm1566 = vmor %vm1564, %vm1565
  %v1567 = vsel %vm1566, %v1559, %v1563
  %v1568 = vand.u32 2147483647, %v1513
  %vm1569 = vcmp.eq.f32.partialorder %v1568, 8.507059e+37
  %v1570 = vand.u32 %v1513, 2147483648
  %v1571 = vor.u32 1.1754944e-38, %v1570
  %v1572 = vsel %vm1569, %v1571, %v1567
  %v1573 = vmul.f32 1.0, %v1572
  %v1574 = vadd.f32 %v1418, %v1471
  %v1575 = vadd.f32 %v1421, %v1474
  %v1576 = vadd.f32 %v1424, %v1477
  %v1577 = vadd.f32 %v1427, %v1480
  %v1578 = vxor.u32 %v1574, 2147483648
  %v1579 = vxor.u32 %v1575, 2147483648
  %v1580 = vxor.u32 %v1576, 2147483648
  %v1581 = vxor.u32 %v1577, 2147483648
  %v1582 = vmul.f32 %v1578, 1.442695
  %v1583 = vpow.pop %v1582
  %v1584 = vmul.f32 %v1579, 1.442695
  %v1585 = vpow.pop %v1584
  %v1586 = vmul.f32 %v1580, 1.442695
  %v1587 = vpow.pop %v1586
  %v1588 = vmul.f32 %v1581, 1.442695
  %v1589 = vpow.pop %v1588
  %v1590 = vadd.f32 %v1583, 1.0
  %v1591 = vadd.f32 %v1585, 1.0
  %v1592 = vadd.f32 %v1587, 1.0
  %v1593 = vadd.f32 %v1589, 1.0
  %v1594 = vrcp.pop %v1590
  %v1595 = vmul.f32 %v1590, %v1594
  %v1596 = vsub.f32 1.0, %v1595
  %v1597 = vmul.f32 %v1594, %v1596
  %v1598 = vadd.f32 %v1594, %v1597
  %vm1599 = vweird.f32 %v1590
  %vm1600 = vweird.f32 %v1594
  %vm1601 = vmor %vm1599, %vm1600
  %v1602 = vsel %vm1601, %v1594, %v1598
  %v1603 = vand.u32 2147483647, %v1590
  %vm1604 = vcmp.eq.f32.partialorder %v1603, 8.507059e+37
  %v1605 = vand.u32 %v1590, 2147483648
  %v1606 = vor.u32 1.1754944e-38, %v1605
  %v1607 = vsel %vm1604, %v1606, %v1602
  %v1608 = vmul.f32 1.0, %v1607
  %v1609 = vrcp.pop %v1591
  %v1610 = vmul.f32 %v1591, %v1609
  %v1611 = vsub.f32 1.0, %v1610
  %v1612 = vmul.f32 %v1609, %v1611
  %v1613 = vadd.f32 %v1609, %v1612
  %vm1614 = vweird.f32 %v1591
  %vm1615 = vweird.f32 %v1609
  %vm1616 = vmor %vm1614, %vm1615
  %v1617 = vsel %vm1616, %v1609, %v1613
  %v1618 = vand.u32 2147483647, %v1591
  %vm1619 = vcmp.eq.f32.partialorder %v1618, 8.507059e+37
  %v1620 = vand.u32 %v1591, 2147483648
  %v1621 = vor.u32 1.1754944e-38, %v1620
  %v1622 = vsel %vm1619, %v1621, %v1617
  %v1623 = vmul.f32 1.0, %v1622
  %v1624 = vrcp.pop %v1592
  %v1625 = vmul.f32 %v1592, %v1624
  %v1626 = vsub.f32 1.0, %v1625
  %v1627 = vmul.f32 %v1624, %v1626
  %v1628 = vadd.f32 %v1624, %v1627
  %vm1629 = vweird.f32 %v1592
  %vm1630 = vweird.f32 %v1624
  %vm1631 = vmor %vm1629, %vm1630
  %v1632 = vsel %vm1631, %v1624, %v1628
  %v1633 = vand.u32 2147483647, %v1592
  %vm1634 = vcmp.eq.f32.partialorder %v1633, 8.507059e+37
  %v1635 = vand.u32 %v1592, 2147483648
  %v1636 = vor.u32 1.1754944e-38, %v1635
  %v1637 = vsel %vm1634, %v1636, %v1632
  %v1638 = vmul.f32 1.0, %v1637
  %v1639 = vrcp.pop %v1593
  %v1640 = vmul.f32 %v1593, %v1639
  %v1641 = vsub.f32 1.0, %v1640
  %v1642 = vmul.f32 %v1639, %v1641
  %v1643 = vadd.f32 %v1639, %v1642
  %vm1644 = vweird.f32 %v1593
  %vm1645 = vweird.f32 %v1639
  %vm1646 = vmor %vm1644, %vm1645
  %v1647 = vsel %vm1646, %v1639, %v1643
  %v1648 = vand.u32 2147483647, %v1593
  %vm1649 = vcmp.eq.f32.partialorder %v1648, 8.507059e+37
  %v1650 = vand.u32 %v1593, 2147483648
  %v1651 = vor.u32 1.1754944e-38, %v1650
  %v1652 = vsel %vm1649, %v1651, %v1647
  %v1653 = vmul.f32 1.0, %v1652
  %v1654 = vadd.f32 %v1483, %v51
  %v1655 = vadd.f32 %v1486, %v56
  %v1656 = vadd.f32 %v1489, %v61
  %v1657 = vadd.f32 %v1492, %v66
  %v1658 = vmul.f32 %v1528, %v1654
  %v1659 = vmul.f32 %v1543, %v1655
  %v1660 = vmul.f32 %v1558, %v1656
  %v1661 = vmul.f32 %v1573, %v1657
  %v1662 = vadd.f32 %v1430, %v1658
  %v1663 = vadd.f32 %v1433, %v1659
  %v1664 = vadd.f32 %v1436, %v1660
  %v1665 = vadd.f32 %v1439, %v1661
  %v1666 = vtanh.pop %v1662
  %v1667 = vtanh.pop %v1663
  %v1668 = vtanh.pop %v1664
  %v1669 = vtanh.pop %v1665
  %v1670 = vsub.f32 %v1370, %v1666
  %v1671 = vsub.f32 %v1371, %v1667
  %v1672 = vsub.f32 %v1372, %v1668
  %v1673 = vsub.f32 %v1373, %v1669
  %v1674 = vmul.f32 %v1608, %v1670
  %v1675 = vmul.f32 %v1623, %v1671
  %v1676 = vmul.f32 %v1638, %v1672
  %v1677 = vmul.f32 %v1653, %v1673
  %v1678 = vadd.f32 %v1666, %v1674
  %v1679 = vadd.f32 %v1667, %v1675
  %v1680 = vadd.f32 %v1668, %v1676
  %v1681 = vadd.f32 %v1669, %v1677
  %s1682 = scalar_lea.vmem %s5, 128
  %1683 = vst [vmem:[%s1682] sm:$0xff] %v1678
  %1684 = vst [vmem:[%s1682 + $0x8] sm:$0xff] %v1679
  %1685 = vst [vmem:[%s1682 + $0x10] sm:$0xff] %v1680
  %1686 = vst [vmem:[%s1682 + $0x18] sm:$0xff] %v1681
  %s1687 = scalar_lea.vmem %s0, 5
  %v1688 = vld [vmem:[%s1687] sm:$0x1]
  %v1689 = vperm.slane %v1688, 0
  %vm1690 = vcmp.eq.s32.totalorder %v69, %v1689
  %vm1691 = vcmp.eq.s32.totalorder %v70, %v1689
  %v1692 = vsel %vm1690, 1, 0
  %v1693 = vsel %vm1691, 1, 0
  %v1694 = vcvt.s32.f32 %v1692
  %v1695 = vcvt.s32.f32 %v1693
  %1696 = vmatpush.msra.mxu0 0.0
  %1697 = vmatpush.msra.mxu0 0.0
  %1698 = vmatpush.msra.mxu0 0.0
  %1699 = vmatpush.msra.mxu0 0.0
  %1700 = vmatpush.msra.mxu0 0.0
  %1701 = vmatpush.msra.mxu0 0.0
  %1702 = vmatpush.msra.mxu0 0.0
  %1703 = vmatpush.msra.mxu0 0.0
  %1704 = vmatpush.msra.mxu0 0.0
  %1705 = vmatpush.msra.mxu0 0.0
  %1706 = vmatpush.msra.mxu0 0.0
  %1707 = vmatpush.msra.mxu0 0.0
  %1708 = vmatpush.msra.mxu0 0.0
  %1709 = vmatpush.msra.mxu0 0.0
  %1710 = vmatpush.msra.mxu0 %v1695
  %1711 = vmatpush.msra.mxu0 %v1694
  %1712 = vmatmul.f32.gmra.mxu0 %v85
  %v1713 = vpop.f32.mrf.mxu0
  %v1714 = vadd.f32 0.0, %v1713
  %1715 = vmatmul.f32.gmra.mxu0 %v88
  %v1716 = vpop.f32.mrf.mxu0
  %v1717 = vadd.f32 0.0, %v1716
  %1718 = vmatmul.f32.gmra.mxu0 %v91
  %v1719 = vpop.f32.mrf.mxu0
  %v1720 = vadd.f32 0.0, %v1719
  %1721 = vmatmul.f32.gmra.mxu0 %v94
  %v1722 = vpop.f32.mrf.mxu0
  %v1723 = vadd.f32 0.0, %v1722
  %1724 = vmatmul.f32.gmra.mxu0 %v97
  %v1725 = vpop.f32.mrf.mxu0
  %v1726 = vadd.f32 0.0, %v1725
  %1727 = vmatmul.f32.gmra.mxu0 %v100
  %v1728 = vpop.f32.mrf.mxu0
  %v1729 = vadd.f32 0.0, %v1728
  %1730 = vmatmul.f32.gmra.mxu0 %v103
  %v1731 = vpop.f32.mrf.mxu0
  %v1732 = vadd.f32 0.0, %v1731
  %1733 = vmatmul.f32.gmra.mxu0 %v106
  %v1734 = vpop.f32.mrf.mxu0
  %v1735 = vadd.f32 0.0, %v1734
  %1736 = vmatmul.f32.gmra.mxu0 %v109
  %v1737 = vpop.f32.mrf.mxu0
  %v1738 = vadd.f32 0.0, %v1737
  %1739 = vmatmul.f32.gmra.mxu0 %v112
  %v1740 = vpop.f32.mrf.mxu0
  %v1741 = vadd.f32 0.0, %v1740
  %1742 = vmatmul.f32.gmra.mxu0 %v115
  %v1743 = vpop.f32.mrf.mxu0
  %v1744 = vadd.f32 0.0, %v1743
  %1745 = vmatmul.f32.gmra.mxu0 %v118
  %v1746 = vpop.f32.mrf.mxu0
  %v1747 = vadd.f32 0.0, %v1746
  %1748 = vdwg.mxu0
  %1749 = vmatpush.msra.mxu0 0.0
  %1750 = vmatpush.msra.mxu0 0.0
  %1751 = vmatpush.msra.mxu0 0.0
  %1752 = vmatpush.msra.mxu0 0.0
  %1753 = vmatpush.msra.mxu0 0.0
  %1754 = vmatpush.msra.mxu0 0.0
  %1755 = vmatpush.msra.mxu0 0.0
  %1756 = vmatpush.msra.mxu0 0.0
  %1757 = vmatpush.msra.mxu0 0.0
  %1758 = vmatpush.msra.mxu0 0.0
  %1759 = vmatpush.msra.mxu0 0.0
  %1760 = vmatpush.msra.mxu0 0.0
  %1761 = vmatpush.msra.mxu0 %v1681
  %1762 = vmatpush.msra.mxu0 %v1680
  %1763 = vmatpush.msra.mxu0 %v1679
  %1764 = vmatpush.msra.mxu0 %v1678
  %1765 = vmatmul.f32.gmra.mxu0 %v175
  %v1766 = vpop.f32.mrf.mxu0
  %v1767 = vadd.f32 0.0, %v1766
  %1768 = vmatmul.f32.gmra.mxu0 %v178
  %v1769 = vpop.f32.mrf.mxu0
  %v1770 = vadd.f32 0.0, %v1769
  %1771 = vmatmul.f32.gmra.mxu0 %v181
  %v1772 = vpop.f32.mrf.mxu0
  %v1773 = vadd.f32 0.0, %v1772
  %1774 = vmatmul.f32.gmra.mxu0 %v184
  %v1775 = vpop.f32.mrf.mxu0
  %v1776 = vadd.f32 0.0, %v1775
  %1777 = vmatmul.f32.gmra.mxu0 %v187
  %v1778 = vpop.f32.mrf.mxu0
  %v1779 = vadd.f32 0.0, %v1778
  %1780 = vmatmul.f32.gmra.mxu0 %v190
  %v1781 = vpop.f32.mrf.mxu0
  %v1782 = vadd.f32 0.0, %v1781
  %1783 = vmatmul.f32.gmra.mxu0 %v193
  %v1784 = vpop.f32.mrf.mxu0
  %v1785 = vadd.f32 0.0, %v1784
  %1786 = vmatmul.f32.gmra.mxu0 %v196
  %v1787 = vpop.f32.mrf.mxu0
  %v1788 = vadd.f32 0.0, %v1787
  %1789 = vmatmul.f32.gmra.mxu0 %v199
  %v1790 = vpop.f32.mrf.mxu0
  %v1791 = vadd.f32 0.0, %v1790
  %1792 = vmatmul.f32.gmra.mxu0 %v202
  %v1793 = vpop.f32.mrf.mxu0
  %v1794 = vadd.f32 0.0, %v1793
  %1795 = vmatmul.f32.gmra.mxu0 %v205
  %v1796 = vpop.f32.mrf.mxu0
  %v1797 = vadd.f32 0.0, %v1796
  %1798 = vmatmul.f32.gmra.mxu0 %v208
  %v1799 = vpop.f32.mrf.mxu0
  %v1800 = vadd.f32 0.0, %v1799
  %1801 = vdwg.mxu0
  %v1802 = vadd.f32 %v1714, %v1767
  %v1803 = vadd.f32 %v1717, %v1770
  %v1804 = vadd.f32 %v1720, %v1773
  %v1805 = vadd.f32 %v1723, %v1776
  %v1806 = vxor.u32 %v1802, 2147483648
  %v1807 = vxor.u32 %v1803, 2147483648
  %v1808 = vxor.u32 %v1804, 2147483648
  %v1809 = vxor.u32 %v1805, 2147483648
  %v1810 = vmul.f32 %v1806, 1.442695
  %v1811 = vpow.pop %v1810
  %v1812 = vmul.f32 %v1807, 1.442695
  %v1813 = vpow.pop %v1812
  %v1814 = vmul.f32 %v1808, 1.442695
  %v1815 = vpow.pop %v1814
  %v1816 = vmul.f32 %v1809, 1.442695
  %v1817 = vpow.pop %v1816
  %v1818 = vadd.f32 %v1811, 1.0
  %v1819 = vadd.f32 %v1813, 1.0
  %v1820 = vadd.f32 %v1815, 1.0
  %v1821 = vadd.f32 %v1817, 1.0
  %v1822 = vrcp.pop %v1818
  %v1823 = vmul.f32 %v1818, %v1822
  %v1824 = vsub.f32 1.0, %v1823
  %v1825 = vmul.f32 %v1822, %v1824
  %v1826 = vadd.f32 %v1822, %v1825
  %vm1827 = vweird.f32 %v1818
  %vm1828 = vweird.f32 %v1822
  %vm1829 = vmor %vm1827, %vm1828
  %v1830 = vsel %vm1829, %v1822, %v1826
  %v1831 = vand.u32 2147483647, %v1818
  %vm1832 = vcmp.eq.f32.partialorder %v1831, 8.507059e+37
  %v1833 = vand.u32 %v1818, 2147483648
  %v1834 = vor.u32 1.1754944e-38, %v1833
  %v1835 = vsel %vm1832, %v1834, %v1830
  %v1836 = vmul.f32 1.0, %v1835
  %v1837 = vrcp.pop %v1819
  %v1838 = vmul.f32 %v1819, %v1837
  %v1839 = vsub.f32 1.0, %v1838
  %v1840 = vmul.f32 %v1837, %v1839
  %v1841 = vadd.f32 %v1837, %v1840
  %vm1842 = vweird.f32 %v1819
  %vm1843 = vweird.f32 %v1837
  %vm1844 = vmor %vm1842, %vm1843
  %v1845 = vsel %vm1844, %v1837, %v1841
  %v1846 = vand.u32 2147483647, %v1819
  %vm1847 = vcmp.eq.f32.partialorder %v1846, 8.507059e+37
  %v1848 = vand.u32 %v1819, 2147483648
  %v1849 = vor.u32 1.1754944e-38, %v1848
  %v1850 = vsel %vm1847, %v1849, %v1845
  %v1851 = vmul.f32 1.0, %v1850
  %v1852 = vrcp.pop %v1820
  %v1853 = vmul.f32 %v1820, %v1852
  %v1854 = vsub.f32 1.0, %v1853
  %v1855 = vmul.f32 %v1852, %v1854
  %v1856 = vadd.f32 %v1852, %v1855
  %vm1857 = vweird.f32 %v1820
  %vm1858 = vweird.f32 %v1852
  %vm1859 = vmor %vm1857, %vm1858
  %v1860 = vsel %vm1859, %v1852, %v1856
  %v1861 = vand.u32 2147483647, %v1820
  %vm1862 = vcmp.eq.f32.partialorder %v1861, 8.507059e+37
  %v1863 = vand.u32 %v1820, 2147483648
  %v1864 = vor.u32 1.1754944e-38, %v1863
  %v1865 = vsel %vm1862, %v1864, %v1860
  %v1866 = vmul.f32 1.0, %v1865
  %v1867 = vrcp.pop %v1821
  %v1868 = vmul.f32 %v1821, %v1867
  %v1869 = vsub.f32 1.0, %v1868
  %v1870 = vmul.f32 %v1867, %v1869
  %v1871 = vadd.f32 %v1867, %v1870
  %vm1872 = vweird.f32 %v1821
  %vm1873 = vweird.f32 %v1867
  %vm1874 = vmor %vm1872, %vm1873
  %v1875 = vsel %vm1874, %v1867, %v1871
  %v1876 = vand.u32 2147483647, %v1821
  %vm1877 = vcmp.eq.f32.partialorder %v1876, 8.507059e+37
  %v1878 = vand.u32 %v1821, 2147483648
  %v1879 = vor.u32 1.1754944e-38, %v1878
  %v1880 = vsel %vm1877, %v1879, %v1875
  %v1881 = vmul.f32 1.0, %v1880
  %v1882 = vadd.f32 %v1726, %v1779
  %v1883 = vadd.f32 %v1729, %v1782
  %v1884 = vadd.f32 %v1732, %v1785
  %v1885 = vadd.f32 %v1735, %v1788
  %v1886 = vxor.u32 %v1882, 2147483648
  %v1887 = vxor.u32 %v1883, 2147483648
  %v1888 = vxor.u32 %v1884, 2147483648
  %v1889 = vxor.u32 %v1885, 2147483648
  %v1890 = vmul.f32 %v1886, 1.442695
  %v1891 = vpow.pop %v1890
  %v1892 = vmul.f32 %v1887, 1.442695
  %v1893 = vpow.pop %v1892
  %v1894 = vmul.f32 %v1888, 1.442695
  %v1895 = vpow.pop %v1894
  %v1896 = vmul.f32 %v1889, 1.442695
  %v1897 = vpow.pop %v1896
  %v1898 = vadd.f32 %v1891, 1.0
  %v1899 = vadd.f32 %v1893, 1.0
  %v1900 = vadd.f32 %v1895, 1.0
  %v1901 = vadd.f32 %v1897, 1.0
  %v1902 = vrcp.pop %v1898
  %v1903 = vmul.f32 %v1898, %v1902
  %v1904 = vsub.f32 1.0, %v1903
  %v1905 = vmul.f32 %v1902, %v1904
  %v1906 = vadd.f32 %v1902, %v1905
  %vm1907 = vweird.f32 %v1898
  %vm1908 = vweird.f32 %v1902
  %vm1909 = vmor %vm1907, %vm1908
  %v1910 = vsel %vm1909, %v1902, %v1906
  %v1911 = vand.u32 2147483647, %v1898
  %vm1912 = vcmp.eq.f32.partialorder %v1911, 8.507059e+37
  %v1913 = vand.u32 %v1898, 2147483648
  %v1914 = vor.u32 1.1754944e-38, %v1913
  %v1915 = vsel %vm1912, %v1914, %v1910
  %v1916 = vmul.f32 1.0, %v1915
  %v1917 = vrcp.pop %v1899
  %v1918 = vmul.f32 %v1899, %v1917
  %v1919 = vsub.f32 1.0, %v1918
  %v1920 = vmul.f32 %v1917, %v1919
  %v1921 = vadd.f32 %v1917, %v1920
  %vm1922 = vweird.f32 %v1899
  %vm1923 = vweird.f32 %v1917
  %vm1924 = vmor %vm1922, %vm1923
  %v1925 = vsel %vm1924, %v1917, %v1921
  %v1926 = vand.u32 2147483647, %v1899
  %vm1927 = vcmp.eq.f32.partialorder %v1926, 8.507059e+37
  %v1928 = vand.u32 %v1899, 2147483648
  %v1929 = vor.u32 1.1754944e-38, %v1928
  %v1930 = vsel %vm1927, %v1929, %v1925
  %v1931 = vmul.f32 1.0, %v1930
  %v1932 = vrcp.pop %v1900
  %v1933 = vmul.f32 %v1900, %v1932
  %v1934 = vsub.f32 1.0, %v1933
  %v1935 = vmul.f32 %v1932, %v1934
  %v1936 = vadd.f32 %v1932, %v1935
  %vm1937 = vweird.f32 %v1900
  %vm1938 = vweird.f32 %v1932
  %vm1939 = vmor %vm1937, %vm1938
  %v1940 = vsel %vm1939, %v1932, %v1936
  %v1941 = vand.u32 2147483647, %v1900
  %vm1942 = vcmp.eq.f32.partialorder %v1941, 8.507059e+37
  %v1943 = vand.u32 %v1900, 2147483648
  %v1944 = vor.u32 1.1754944e-38, %v1943
  %v1945 = vsel %vm1942, %v1944, %v1940
  %v1946 = vmul.f32 1.0, %v1945
  %v1947 = vrcp.pop %v1901
  %v1948 = vmul.f32 %v1901, %v1947
  %v1949 = vsub.f32 1.0, %v1948
  %v1950 = vmul.f32 %v1947, %v1949
  %v1951 = vadd.f32 %v1947, %v1950
  %vm1952 = vweird.f32 %v1901
  %vm1953 = vweird.f32 %v1947
  %vm1954 = vmor %vm1952, %vm1953
  %v1955 = vsel %vm1954, %v1947, %v1951
  %v1956 = vand.u32 2147483647, %v1901
  %vm1957 = vcmp.eq.f32.partialorder %v1956, 8.507059e+37
  %v1958 = vand.u32 %v1901, 2147483648
  %v1959 = vor.u32 1.1754944e-38, %v1958
  %v1960 = vsel %vm1957, %v1959, %v1955
  %v1961 = vmul.f32 1.0, %v1960
  %v1962 = vadd.f32 %v1791, %v51
  %v1963 = vadd.f32 %v1794, %v56
  %v1964 = vadd.f32 %v1797, %v61
  %v1965 = vadd.f32 %v1800, %v66
  %v1966 = vmul.f32 %v1836, %v1962
  %v1967 = vmul.f32 %v1851, %v1963
  %v1968 = vmul.f32 %v1866, %v1964
  %v1969 = vmul.f32 %v1881, %v1965
  %v1970 = vadd.f32 %v1738, %v1966
  %v1971 = vadd.f32 %v1741, %v1967
  %v1972 = vadd.f32 %v1744, %v1968
  %v1973 = vadd.f32 %v1747, %v1969
  %v1974 = vtanh.pop %v1970
  %v1975 = vtanh.pop %v1971
  %v1976 = vtanh.pop %v1972
  %v1977 = vtanh.pop %v1973
  %v1978 = vsub.f32 %v1678, %v1974
  %v1979 = vsub.f32 %v1679, %v1975
  %v1980 = vsub.f32 %v1680, %v1976
  %v1981 = vsub.f32 %v1681, %v1977
  %v1982 = vmul.f32 %v1916, %v1978
  %v1983 = vmul.f32 %v1931, %v1979
  %v1984 = vmul.f32 %v1946, %v1980
  %v1985 = vmul.f32 %v1961, %v1981
  %v1986 = vadd.f32 %v1974, %v1982
  %v1987 = vadd.f32 %v1975, %v1983
  %v1988 = vadd.f32 %v1976, %v1984
  %v1989 = vadd.f32 %v1977, %v1985
  %s1990 = scalar_lea.vmem %s5, 160
  %1991 = vst [vmem:[%s1990] sm:$0xff] %v1986
  %1992 = vst [vmem:[%s1990 + $0x8] sm:$0xff] %v1987
  %1993 = vst [vmem:[%s1990 + $0x10] sm:$0xff] %v1988
  %1994 = vst [vmem:[%s1990 + $0x18] sm:$0xff] %v1989
  %s1995 = scalar_lea.vmem %s0, 6
  %v1996 = vld [vmem:[%s1995] sm:$0x1]
  %v1997 = vperm.slane %v1996, 0
  %vm1998 = vcmp.eq.s32.totalorder %v69, %v1997
  %vm1999 = vcmp.eq.s32.totalorder %v70, %v1997
  %v2000 = vsel %vm1998, 1, 0
  %v2001 = vsel %vm1999, 1, 0
  %v2002 = vcvt.s32.f32 %v2000
  %v2003 = vcvt.s32.f32 %v2001
  %2004 = vmatpush.msra.mxu0 0.0
  %2005 = vmatpush.msra.mxu0 0.0
  %2006 = vmatpush.msra.mxu0 0.0
  %2007 = vmatpush.msra.mxu0 0.0
  %2008 = vmatpush.msra.mxu0 0.0
  %2009 = vmatpush.msra.mxu0 0.0
  %2010 = vmatpush.msra.mxu0 0.0
  %2011 = vmatpush.msra.mxu0 0.0
  %2012 = vmatpush.msra.mxu0 0.0
  %2013 = vmatpush.msra.mxu0 0.0
  %2014 = vmatpush.msra.mxu0 0.0
  %2015 = vmatpush.msra.mxu0 0.0
  %2016 = vmatpush.msra.mxu0 0.0
  %2017 = vmatpush.msra.mxu0 0.0
  %2018 = vmatpush.msra.mxu0 %v2003
  %2019 = vmatpush.msra.mxu0 %v2002
  %2020 = vmatmul.f32.gmra.mxu0 %v85
  %v2021 = vpop.f32.mrf.mxu0
  %v2022 = vadd.f32 0.0, %v2021
  %2023 = vmatmul.f32.gmra.mxu0 %v88
  %v2024 = vpop.f32.mrf.mxu0
  %v2025 = vadd.f32 0.0, %v2024
  %2026 = vmatmul.f32.gmra.mxu0 %v91
  %v2027 = vpop.f32.mrf.mxu0
  %v2028 = vadd.f32 0.0, %v2027
  %2029 = vmatmul.f32.gmra.mxu0 %v94
  %v2030 = vpop.f32.mrf.mxu0
  %v2031 = vadd.f32 0.0, %v2030
  %2032 = vmatmul.f32.gmra.mxu0 %v97
  %v2033 = vpop.f32.mrf.mxu0
  %v2034 = vadd.f32 0.0, %v2033
  %2035 = vmatmul.f32.gmra.mxu0 %v100
  %v2036 = vpop.f32.mrf.mxu0
  %v2037 = vadd.f32 0.0, %v2036
  %2038 = vmatmul.f32.gmra.mxu0 %v103
  %v2039 = vpop.f32.mrf.mxu0
  %v2040 = vadd.f32 0.0, %v2039
  %2041 = vmatmul.f32.gmra.mxu0 %v106
  %v2042 = vpop.f32.mrf.mxu0
  %v2043 = vadd.f32 0.0, %v2042
  %2044 = vmatmul.f32.gmra.mxu0 %v109
  %v2045 = vpop.f32.mrf.mxu0
  %v2046 = vadd.f32 0.0, %v2045
  %2047 = vmatmul.f32.gmra.mxu0 %v112
  %v2048 = vpop.f32.mrf.mxu0
  %v2049 = vadd.f32 0.0, %v2048
  %2050 = vmatmul.f32.gmra.mxu0 %v115
  %v2051 = vpop.f32.mrf.mxu0
  %v2052 = vadd.f32 0.0, %v2051
  %2053 = vmatmul.f32.gmra.mxu0 %v118
  %v2054 = vpop.f32.mrf.mxu0
  %v2055 = vadd.f32 0.0, %v2054
  %2056 = vdwg.mxu0
  %2057 = vmatpush.msra.mxu0 0.0
  %2058 = vmatpush.msra.mxu0 0.0
  %2059 = vmatpush.msra.mxu0 0.0
  %2060 = vmatpush.msra.mxu0 0.0
  %2061 = vmatpush.msra.mxu0 0.0
  %2062 = vmatpush.msra.mxu0 0.0
  %2063 = vmatpush.msra.mxu0 0.0
  %2064 = vmatpush.msra.mxu0 0.0
  %2065 = vmatpush.msra.mxu0 0.0
  %2066 = vmatpush.msra.mxu0 0.0
  %2067 = vmatpush.msra.mxu0 0.0
  %2068 = vmatpush.msra.mxu0 0.0
  %2069 = vmatpush.msra.mxu0 %v1989
  %2070 = vmatpush.msra.mxu0 %v1988
  %2071 = vmatpush.msra.mxu0 %v1987
  %2072 = vmatpush.msra.mxu0 %v1986
  %2073 = vmatmul.f32.gmra.mxu0 %v175
  %v2074 = vpop.f32.mrf.mxu0
  %v2075 = vadd.f32 0.0, %v2074
  %2076 = vmatmul.f32.gmra.mxu0 %v178
  %v2077 = vpop.f32.mrf.mxu0
  %v2078 = vadd.f32 0.0, %v2077
  %2079 = vmatmul.f32.gmra.mxu0 %v181
  %v2080 = vpop.f32.mrf.mxu0
  %v2081 = vadd.f32 0.0, %v2080
  %2082 = vmatmul.f32.gmra.mxu0 %v184
  %v2083 = vpop.f32.mrf.mxu0
  %v2084 = vadd.f32 0.0, %v2083
  %2085 = vmatmul.f32.gmra.mxu0 %v187
  %v2086 = vpop.f32.mrf.mxu0
  %v2087 = vadd.f32 0.0, %v2086
  %2088 = vmatmul.f32.gmra.mxu0 %v190
  %v2089 = vpop.f32.mrf.mxu0
  %v2090 = vadd.f32 0.0, %v2089
  %2091 = vmatmul.f32.gmra.mxu0 %v193
  %v2092 = vpop.f32.mrf.mxu0
  %v2093 = vadd.f32 0.0, %v2092
  %2094 = vmatmul.f32.gmra.mxu0 %v196
  %v2095 = vpop.f32.mrf.mxu0
  %v2096 = vadd.f32 0.0, %v2095
  %2097 = vmatmul.f32.gmra.mxu0 %v199
  %v2098 = vpop.f32.mrf.mxu0
  %v2099 = vadd.f32 0.0, %v2098
  %2100 = vmatmul.f32.gmra.mxu0 %v202
  %v2101 = vpop.f32.mrf.mxu0
  %v2102 = vadd.f32 0.0, %v2101
  %2103 = vmatmul.f32.gmra.mxu0 %v205
  %v2104 = vpop.f32.mrf.mxu0
  %v2105 = vadd.f32 0.0, %v2104
  %2106 = vmatmul.f32.gmra.mxu0 %v208
  %v2107 = vpop.f32.mrf.mxu0
  %v2108 = vadd.f32 0.0, %v2107
  %2109 = vdwg.mxu0
  %v2110 = vadd.f32 %v2022, %v2075
  %v2111 = vadd.f32 %v2025, %v2078
  %v2112 = vadd.f32 %v2028, %v2081
  %v2113 = vadd.f32 %v2031, %v2084
  %v2114 = vxor.u32 %v2110, 2147483648
  %v2115 = vxor.u32 %v2111, 2147483648
  %v2116 = vxor.u32 %v2112, 2147483648
  %v2117 = vxor.u32 %v2113, 2147483648
  %v2118 = vmul.f32 %v2114, 1.442695
  %v2119 = vpow.pop %v2118
  %v2120 = vmul.f32 %v2115, 1.442695
  %v2121 = vpow.pop %v2120
  %v2122 = vmul.f32 %v2116, 1.442695
  %v2123 = vpow.pop %v2122
  %v2124 = vmul.f32 %v2117, 1.442695
  %v2125 = vpow.pop %v2124
  %v2126 = vadd.f32 %v2119, 1.0
  %v2127 = vadd.f32 %v2121, 1.0
  %v2128 = vadd.f32 %v2123, 1.0
  %v2129 = vadd.f32 %v2125, 1.0
  %v2130 = vrcp.pop %v2126
  %v2131 = vmul.f32 %v2126, %v2130
  %v2132 = vsub.f32 1.0, %v2131
  %v2133 = vmul.f32 %v2130, %v2132
  %v2134 = vadd.f32 %v2130, %v2133
  %vm2135 = vweird.f32 %v2126
  %vm2136 = vweird.f32 %v2130
  %vm2137 = vmor %vm2135, %vm2136
  %v2138 = vsel %vm2137, %v2130, %v2134
  %v2139 = vand.u32 2147483647, %v2126
  %vm2140 = vcmp.eq.f32.partialorder %v2139, 8.507059e+37
  %v2141 = vand.u32 %v2126, 2147483648
  %v2142 = vor.u32 1.1754944e-38, %v2141
  %v2143 = vsel %vm2140, %v2142, %v2138
  %v2144 = vmul.f32 1.0, %v2143
  %v2145 = vrcp.pop %v2127
  %v2146 = vmul.f32 %v2127, %v2145
  %v2147 = vsub.f32 1.0, %v2146
  %v2148 = vmul.f32 %v2145, %v2147
  %v2149 = vadd.f32 %v2145, %v2148
  %vm2150 = vweird.f32 %v2127
  %vm2151 = vweird.f32 %v2145
  %vm2152 = vmor %vm2150, %vm2151
  %v2153 = vsel %vm2152, %v2145, %v2149
  %v2154 = vand.u32 2147483647, %v2127
  %vm2155 = vcmp.eq.f32.partialorder %v2154, 8.507059e+37
  %v2156 = vand.u32 %v2127, 2147483648
  %v2157 = vor.u32 1.1754944e-38, %v2156
  %v2158 = vsel %vm2155, %v2157, %v2153
  %v2159 = vmul.f32 1.0, %v2158
  %v2160 = vrcp.pop %v2128
  %v2161 = vmul.f32 %v2128, %v2160
  %v2162 = vsub.f32 1.0, %v2161
  %v2163 = vmul.f32 %v2160, %v2162
  %v2164 = vadd.f32 %v2160, %v2163
  %vm2165 = vweird.f32 %v2128
  %vm2166 = vweird.f32 %v2160
  %vm2167 = vmor %vm2165, %vm2166
  %v2168 = vsel %vm2167, %v2160, %v2164
  %v2169 = vand.u32 2147483647, %v2128
  %vm2170 = vcmp.eq.f32.partialorder %v2169, 8.507059e+37
  %v2171 = vand.u32 %v2128, 2147483648
  %v2172 = vor.u32 1.1754944e-38, %v2171
  %v2173 = vsel %vm2170, %v2172, %v2168
  %v2174 = vmul.f32 1.0, %v2173
  %v2175 = vrcp.pop %v2129
  %v2176 = vmul.f32 %v2129, %v2175
  %v2177 = vsub.f32 1.0, %v2176
  %v2178 = vmul.f32 %v2175, %v2177
  %v2179 = vadd.f32 %v2175, %v2178
  %vm2180 = vweird.f32 %v2129
  %vm2181 = vweird.f32 %v2175
  %vm2182 = vmor %vm2180, %vm2181
  %v2183 = vsel %vm2182, %v2175, %v2179
  %v2184 = vand.u32 2147483647, %v2129
  %vm2185 = vcmp.eq.f32.partialorder %v2184, 8.507059e+37
  %v2186 = vand.u32 %v2129, 2147483648
  %v2187 = vor.u32 1.1754944e-38, %v2186
  %v2188 = vsel %vm2185, %v2187, %v2183
  %v2189 = vmul.f32 1.0, %v2188
  %v2190 = vadd.f32 %v2034, %v2087
  %v2191 = vadd.f32 %v2037, %v2090
  %v2192 = vadd.f32 %v2040, %v2093
  %v2193 = vadd.f32 %v2043, %v2096
  %v2194 = vxor.u32 %v2190, 2147483648
  %v2195 = vxor.u32 %v2191, 2147483648
  %v2196 = vxor.u32 %v2192, 2147483648
  %v2197 = vxor.u32 %v2193, 2147483648
  %v2198 = vmul.f32 %v2194, 1.442695
  %v2199 = vpow.pop %v2198
  %v2200 = vmul.f32 %v2195, 1.442695
  %v2201 = vpow.pop %v2200
  %v2202 = vmul.f32 %v2196, 1.442695
  %v2203 = vpow.pop %v2202
  %v2204 = vmul.f32 %v2197, 1.442695
  %v2205 = vpow.pop %v2204
  %v2206 = vadd.f32 %v2199, 1.0
  %v2207 = vadd.f32 %v2201, 1.0
  %v2208 = vadd.f32 %v2203, 1.0
  %v2209 = vadd.f32 %v2205, 1.0
  %v2210 = vrcp.pop %v2206
  %v2211 = vmul.f32 %v2206, %v2210
  %v2212 = vsub.f32 1.0, %v2211
  %v2213 = vmul.f32 %v2210, %v2212
  %v2214 = vadd.f32 %v2210, %v2213
  %vm2215 = vweird.f32 %v2206
  %vm2216 = vweird.f32 %v2210
  %vm2217 = vmor %vm2215, %vm2216
  %v2218 = vsel %vm2217, %v2210, %v2214
  %v2219 = vand.u32 2147483647, %v2206
  %vm2220 = vcmp.eq.f32.partialorder %v2219, 8.507059e+37
  %v2221 = vand.u32 %v2206, 2147483648
  %v2222 = vor.u32 1.1754944e-38, %v2221
  %v2223 = vsel %vm2220, %v2222, %v2218
  %v2224 = vmul.f32 1.0, %v2223
  %v2225 = vrcp.pop %v2207
  %v2226 = vmul.f32 %v2207, %v2225
  %v2227 = vsub.f32 1.0, %v2226
  %v2228 = vmul.f32 %v2225, %v2227
  %v2229 = vadd.f32 %v2225, %v2228
  %vm2230 = vweird.f32 %v2207
  %vm2231 = vweird.f32 %v2225
  %vm2232 = vmor %vm2230, %vm2231
  %v2233 = vsel %vm2232, %v2225, %v2229
  %v2234 = vand.u32 2147483647, %v2207
  %vm2235 = vcmp.eq.f32.partialorder %v2234, 8.507059e+37
  %v2236 = vand.u32 %v2207, 2147483648
  %v2237 = vor.u32 1.1754944e-38, %v2236
  %v2238 = vsel %vm2235, %v2237, %v2233
  %v2239 = vmul.f32 1.0, %v2238
  %v2240 = vrcp.pop %v2208
  %v2241 = vmul.f32 %v2208, %v2240
  %v2242 = vsub.f32 1.0, %v2241
  %v2243 = vmul.f32 %v2240, %v2242
  %v2244 = vadd.f32 %v2240, %v2243
  %vm2245 = vweird.f32 %v2208
  %vm2246 = vweird.f32 %v2240
  %vm2247 = vmor %vm2245, %vm2246
  %v2248 = vsel %vm2247, %v2240, %v2244
  %v2249 = vand.u32 2147483647, %v2208
  %vm2250 = vcmp.eq.f32.partialorder %v2249, 8.507059e+37
  %v2251 = vand.u32 %v2208, 2147483648
  %v2252 = vor.u32 1.1754944e-38, %v2251
  %v2253 = vsel %vm2250, %v2252, %v2248
  %v2254 = vmul.f32 1.0, %v2253
  %v2255 = vrcp.pop %v2209
  %v2256 = vmul.f32 %v2209, %v2255
  %v2257 = vsub.f32 1.0, %v2256
  %v2258 = vmul.f32 %v2255, %v2257
  %v2259 = vadd.f32 %v2255, %v2258
  %vm2260 = vweird.f32 %v2209
  %vm2261 = vweird.f32 %v2255
  %vm2262 = vmor %vm2260, %vm2261
  %v2263 = vsel %vm2262, %v2255, %v2259
  %v2264 = vand.u32 2147483647, %v2209
  %vm2265 = vcmp.eq.f32.partialorder %v2264, 8.507059e+37
  %v2266 = vand.u32 %v2209, 2147483648
  %v2267 = vor.u32 1.1754944e-38, %v2266
  %v2268 = vsel %vm2265, %v2267, %v2263
  %v2269 = vmul.f32 1.0, %v2268
  %v2270 = vadd.f32 %v2099, %v51
  %v2271 = vadd.f32 %v2102, %v56
  %v2272 = vadd.f32 %v2105, %v61
  %v2273 = vadd.f32 %v2108, %v66
  %v2274 = vmul.f32 %v2144, %v2270
  %v2275 = vmul.f32 %v2159, %v2271
  %v2276 = vmul.f32 %v2174, %v2272
  %v2277 = vmul.f32 %v2189, %v2273
  %v2278 = vadd.f32 %v2046, %v2274
  %v2279 = vadd.f32 %v2049, %v2275
  %v2280 = vadd.f32 %v2052, %v2276
  %v2281 = vadd.f32 %v2055, %v2277
  %v2282 = vtanh.pop %v2278
  %v2283 = vtanh.pop %v2279
  %v2284 = vtanh.pop %v2280
  %v2285 = vtanh.pop %v2281
  %v2286 = vsub.f32 %v1986, %v2282
  %v2287 = vsub.f32 %v1987, %v2283
  %v2288 = vsub.f32 %v1988, %v2284
  %v2289 = vsub.f32 %v1989, %v2285
  %v2290 = vmul.f32 %v2224, %v2286
  %v2291 = vmul.f32 %v2239, %v2287
  %v2292 = vmul.f32 %v2254, %v2288
  %v2293 = vmul.f32 %v2269, %v2289
  %v2294 = vadd.f32 %v2282, %v2290
  %v2295 = vadd.f32 %v2283, %v2291
  %v2296 = vadd.f32 %v2284, %v2292
  %v2297 = vadd.f32 %v2285, %v2293
  %s2298 = scalar_lea.vmem %s5, 192
  %2299 = vst [vmem:[%s2298] sm:$0xff] %v2294
  %2300 = vst [vmem:[%s2298 + $0x8] sm:$0xff] %v2295
  %2301 = vst [vmem:[%s2298 + $0x10] sm:$0xff] %v2296
  %2302 = vst [vmem:[%s2298 + $0x18] sm:$0xff] %v2297
  %s2303 = scalar_lea.vmem %s0, 7
  %v2304 = vld [vmem:[%s2303] sm:$0x1]
  %v2305 = vperm.slane %v2304, 0
  %vm2306 = vcmp.eq.s32.totalorder %v69, %v2305
  %vm2307 = vcmp.eq.s32.totalorder %v70, %v2305
  %v2308 = vsel %vm2306, 1, 0
  %v2309 = vsel %vm2307, 1, 0
  %v2310 = vcvt.s32.f32 %v2308
  %v2311 = vcvt.s32.f32 %v2309
  %2312 = vmatpush.msra.mxu0 0.0
  %2313 = vmatpush.msra.mxu0 0.0
  %2314 = vmatpush.msra.mxu0 0.0
  %2315 = vmatpush.msra.mxu0 0.0
  %2316 = vmatpush.msra.mxu0 0.0
  %2317 = vmatpush.msra.mxu0 0.0
  %2318 = vmatpush.msra.mxu0 0.0
  %2319 = vmatpush.msra.mxu0 0.0
  %2320 = vmatpush.msra.mxu0 0.0
  %2321 = vmatpush.msra.mxu0 0.0
  %2322 = vmatpush.msra.mxu0 0.0
  %2323 = vmatpush.msra.mxu0 0.0
  %2324 = vmatpush.msra.mxu0 0.0
  %2325 = vmatpush.msra.mxu0 0.0
  %2326 = vmatpush.msra.mxu0 %v2311
  %2327 = vmatpush.msra.mxu0 %v2310
  %2328 = vmatmul.f32.gmra.mxu0 %v85
  %v2329 = vpop.f32.mrf.mxu0
  %v2330 = vadd.f32 0.0, %v2329
  %2331 = vmatmul.f32.gmra.mxu0 %v88
  %v2332 = vpop.f32.mrf.mxu0
  %v2333 = vadd.f32 0.0, %v2332
  %2334 = vmatmul.f32.gmra.mxu0 %v91
  %v2335 = vpop.f32.mrf.mxu0
  %v2336 = vadd.f32 0.0, %v2335
  %2337 = vmatmul.f32.gmra.mxu0 %v94
  %v2338 = vpop.f32.mrf.mxu0
  %v2339 = vadd.f32 0.0, %v2338
  %2340 = vmatmul.f32.gmra.mxu0 %v97
  %v2341 = vpop.f32.mrf.mxu0
  %v2342 = vadd.f32 0.0, %v2341
  %2343 = vmatmul.f32.gmra.mxu0 %v100
  %v2344 = vpop.f32.mrf.mxu0
  %v2345 = vadd.f32 0.0, %v2344
  %2346 = vmatmul.f32.gmra.mxu0 %v103
  %v2347 = vpop.f32.mrf.mxu0
  %v2348 = vadd.f32 0.0, %v2347
  %2349 = vmatmul.f32.gmra.mxu0 %v106
  %v2350 = vpop.f32.mrf.mxu0
  %v2351 = vadd.f32 0.0, %v2350
  %2352 = vmatmul.f32.gmra.mxu0 %v109
  %v2353 = vpop.f32.mrf.mxu0
  %v2354 = vadd.f32 0.0, %v2353
  %2355 = vmatmul.f32.gmra.mxu0 %v112
  %v2356 = vpop.f32.mrf.mxu0
  %v2357 = vadd.f32 0.0, %v2356
  %2358 = vmatmul.f32.gmra.mxu0 %v115
  %v2359 = vpop.f32.mrf.mxu0
  %v2360 = vadd.f32 0.0, %v2359
  %2361 = vmatmul.f32.gmra.mxu0 %v118
  %v2362 = vpop.f32.mrf.mxu0
  %v2363 = vadd.f32 0.0, %v2362
  %2364 = vdwg.mxu0
  %2365 = vmatpush.msra.mxu0 0.0
  %2366 = vmatpush.msra.mxu0 0.0
  %2367 = vmatpush.msra.mxu0 0.0
  %2368 = vmatpush.msra.mxu0 0.0
  %2369 = vmatpush.msra.mxu0 0.0
  %2370 = vmatpush.msra.mxu0 0.0
  %2371 = vmatpush.msra.mxu0 0.0
  %2372 = vmatpush.msra.mxu0 0.0
  %2373 = vmatpush.msra.mxu0 0.0
  %2374 = vmatpush.msra.mxu0 0.0
  %2375 = vmatpush.msra.mxu0 0.0
  %2376 = vmatpush.msra.mxu0 0.0
  %2377 = vmatpush.msra.mxu0 %v2297
  %2378 = vmatpush.msra.mxu0 %v2296
  %2379 = vmatpush.msra.mxu0 %v2295
  %2380 = vmatpush.msra.mxu0 %v2294
  %2381 = vmatmul.f32.gmra.mxu0 %v175
  %v2382 = vpop.f32.mrf.mxu0
  %v2383 = vadd.f32 0.0, %v2382
  %2384 = vmatmul.f32.gmra.mxu0 %v178
  %v2385 = vpop.f32.mrf.mxu0
  %v2386 = vadd.f32 0.0, %v2385
  %2387 = vmatmul.f32.gmra.mxu0 %v181
  %v2388 = vpop.f32.mrf.mxu0
  %v2389 = vadd.f32 0.0, %v2388
  %2390 = vmatmul.f32.gmra.mxu0 %v184
  %v2391 = vpop.f32.mrf.mxu0
  %v2392 = vadd.f32 0.0, %v2391
  %2393 = vmatmul.f32.gmra.mxu0 %v187
  %v2394 = vpop.f32.mrf.mxu0
  %v2395 = vadd.f32 0.0, %v2394
  %2396 = vmatmul.f32.gmra.mxu0 %v190
  %v2397 = vpop.f32.mrf.mxu0
  %v2398 = vadd.f32 0.0, %v2397
  %2399 = vmatmul.f32.gmra.mxu0 %v193
  %v2400 = vpop.f32.mrf.mxu0
  %v2401 = vadd.f32 0.0, %v2400
  %2402 = vmatmul.f32.gmra.mxu0 %v196
  %v2403 = vpop.f32.mrf.mxu0
  %v2404 = vadd.f32 0.0, %v2403
  %2405 = vmatmul.f32.gmra.mxu0 %v199
  %v2406 = vpop.f32.mrf.mxu0
  %v2407 = vadd.f32 0.0, %v2406
  %2408 = vmatmul.f32.gmra.mxu0 %v202
  %v2409 = vpop.f32.mrf.mxu0
  %v2410 = vadd.f32 0.0, %v2409
  %2411 = vmatmul.f32.gmra.mxu0 %v205
  %v2412 = vpop.f32.mrf.mxu0
  %v2413 = vadd.f32 0.0, %v2412
  %2414 = vmatmul.f32.gmra.mxu0 %v208
  %v2415 = vpop.f32.mrf.mxu0
  %v2416 = vadd.f32 0.0, %v2415
  %2417 = vdwg.mxu0
  %v2418 = vadd.f32 %v2330, %v2383
  %v2419 = vadd.f32 %v2333, %v2386
  %v2420 = vadd.f32 %v2336, %v2389
  %v2421 = vadd.f32 %v2339, %v2392
  %v2422 = vxor.u32 %v2418, 2147483648
  %v2423 = vxor.u32 %v2419, 2147483648
  %v2424 = vxor.u32 %v2420, 2147483648
  %v2425 = vxor.u32 %v2421, 2147483648
  %v2426 = vmul.f32 %v2422, 1.442695
  %v2427 = vpow.pop %v2426
  %v2428 = vmul.f32 %v2423, 1.442695
  %v2429 = vpow.pop %v2428
  %v2430 = vmul.f32 %v2424, 1.442695
  %v2431 = vpow.pop %v2430
  %v2432 = vmul.f32 %v2425, 1.442695
  %v2433 = vpow.pop %v2432
  %v2434 = vadd.f32 %v2427, 1.0
  %v2435 = vadd.f32 %v2429, 1.0
  %v2436 = vadd.f32 %v2431, 1.0
  %v2437 = vadd.f32 %v2433, 1.0
  %v2438 = vrcp.pop %v2434
  %v2439 = vmul.f32 %v2434, %v2438
  %v2440 = vsub.f32 1.0, %v2439
  %v2441 = vmul.f32 %v2438, %v2440
  %v2442 = vadd.f32 %v2438, %v2441
  %vm2443 = vweird.f32 %v2434
  %vm2444 = vweird.f32 %v2438
  %vm2445 = vmor %vm2443, %vm2444
  %v2446 = vsel %vm2445, %v2438, %v2442
  %v2447 = vand.u32 2147483647, %v2434
  %vm2448 = vcmp.eq.f32.partialorder %v2447, 8.507059e+37
  %v2449 = vand.u32 %v2434, 2147483648
  %v2450 = vor.u32 1.1754944e-38, %v2449
  %v2451 = vsel %vm2448, %v2450, %v2446
  %v2452 = vmul.f32 1.0, %v2451
  %v2453 = vrcp.pop %v2435
  %v2454 = vmul.f32 %v2435, %v2453
  %v2455 = vsub.f32 1.0, %v2454
  %v2456 = vmul.f32 %v2453, %v2455
  %v2457 = vadd.f32 %v2453, %v2456
  %vm2458 = vweird.f32 %v2435
  %vm2459 = vweird.f32 %v2453
  %vm2460 = vmor %vm2458, %vm2459
  %v2461 = vsel %vm2460, %v2453, %v2457
  %v2462 = vand.u32 2147483647, %v2435
  %vm2463 = vcmp.eq.f32.partialorder %v2462, 8.507059e+37
  %v2464 = vand.u32 %v2435, 2147483648
  %v2465 = vor.u32 1.1754944e-38, %v2464
  %v2466 = vsel %vm2463, %v2465, %v2461
  %v2467 = vmul.f32 1.0, %v2466
  %v2468 = vrcp.pop %v2436
  %v2469 = vmul.f32 %v2436, %v2468
  %v2470 = vsub.f32 1.0, %v2469
  %v2471 = vmul.f32 %v2468, %v2470
  %v2472 = vadd.f32 %v2468, %v2471
  %vm2473 = vweird.f32 %v2436
  %vm2474 = vweird.f32 %v2468
  %vm2475 = vmor %vm2473, %vm2474
  %v2476 = vsel %vm2475, %v2468, %v2472
  %v2477 = vand.u32 2147483647, %v2436
  %vm2478 = vcmp.eq.f32.partialorder %v2477, 8.507059e+37
  %v2479 = vand.u32 %v2436, 2147483648
  %v2480 = vor.u32 1.1754944e-38, %v2479
  %v2481 = vsel %vm2478, %v2480, %v2476
  %v2482 = vmul.f32 1.0, %v2481
  %v2483 = vrcp.pop %v2437
  %v2484 = vmul.f32 %v2437, %v2483
  %v2485 = vsub.f32 1.0, %v2484
  %v2486 = vmul.f32 %v2483, %v2485
  %v2487 = vadd.f32 %v2483, %v2486
  %vm2488 = vweird.f32 %v2437
  %vm2489 = vweird.f32 %v2483
  %vm2490 = vmor %vm2488, %vm2489
  %v2491 = vsel %vm2490, %v2483, %v2487
  %v2492 = vand.u32 2147483647, %v2437
  %vm2493 = vcmp.eq.f32.partialorder %v2492, 8.507059e+37
  %v2494 = vand.u32 %v2437, 2147483648
  %v2495 = vor.u32 1.1754944e-38, %v2494
  %v2496 = vsel %vm2493, %v2495, %v2491
  %v2497 = vmul.f32 1.0, %v2496
  %v2498 = vadd.f32 %v2342, %v2395
  %v2499 = vadd.f32 %v2345, %v2398
  %v2500 = vadd.f32 %v2348, %v2401
  %v2501 = vadd.f32 %v2351, %v2404
  %v2502 = vxor.u32 %v2498, 2147483648
  %v2503 = vxor.u32 %v2499, 2147483648
  %v2504 = vxor.u32 %v2500, 2147483648
  %v2505 = vxor.u32 %v2501, 2147483648
  %v2506 = vmul.f32 %v2502, 1.442695
  %v2507 = vpow.pop %v2506
  %v2508 = vmul.f32 %v2503, 1.442695
  %v2509 = vpow.pop %v2508
  %v2510 = vmul.f32 %v2504, 1.442695
  %v2511 = vpow.pop %v2510
  %v2512 = vmul.f32 %v2505, 1.442695
  %v2513 = vpow.pop %v2512
  %v2514 = vadd.f32 %v2507, 1.0
  %v2515 = vadd.f32 %v2509, 1.0
  %v2516 = vadd.f32 %v2511, 1.0
  %v2517 = vadd.f32 %v2513, 1.0
  %v2518 = vrcp.pop %v2514
  %v2519 = vmul.f32 %v2514, %v2518
  %v2520 = vsub.f32 1.0, %v2519
  %v2521 = vmul.f32 %v2518, %v2520
  %v2522 = vadd.f32 %v2518, %v2521
  %vm2523 = vweird.f32 %v2514
  %vm2524 = vweird.f32 %v2518
  %vm2525 = vmor %vm2523, %vm2524
  %v2526 = vsel %vm2525, %v2518, %v2522
  %v2527 = vand.u32 2147483647, %v2514
  %vm2528 = vcmp.eq.f32.partialorder %v2527, 8.507059e+37
  %v2529 = vand.u32 %v2514, 2147483648
  %v2530 = vor.u32 1.1754944e-38, %v2529
  %v2531 = vsel %vm2528, %v2530, %v2526
  %v2532 = vmul.f32 1.0, %v2531
  %v2533 = vrcp.pop %v2515
  %v2534 = vmul.f32 %v2515, %v2533
  %v2535 = vsub.f32 1.0, %v2534
  %v2536 = vmul.f32 %v2533, %v2535
  %v2537 = vadd.f32 %v2533, %v2536
  %vm2538 = vweird.f32 %v2515
  %vm2539 = vweird.f32 %v2533
  %vm2540 = vmor %vm2538, %vm2539
  %v2541 = vsel %vm2540, %v2533, %v2537
  %v2542 = vand.u32 2147483647, %v2515
  %vm2543 = vcmp.eq.f32.partialorder %v2542, 8.507059e+37
  %v2544 = vand.u32 %v2515, 2147483648
  %v2545 = vor.u32 1.1754944e-38, %v2544
  %v2546 = vsel %vm2543, %v2545, %v2541
  %v2547 = vmul.f32 1.0, %v2546
  %v2548 = vrcp.pop %v2516
  %v2549 = vmul.f32 %v2516, %v2548
  %v2550 = vsub.f32 1.0, %v2549
  %v2551 = vmul.f32 %v2548, %v2550
  %v2552 = vadd.f32 %v2548, %v2551
  %vm2553 = vweird.f32 %v2516
  %vm2554 = vweird.f32 %v2548
  %vm2555 = vmor %vm2553, %vm2554
  %v2556 = vsel %vm2555, %v2548, %v2552
  %v2557 = vand.u32 2147483647, %v2516
  %vm2558 = vcmp.eq.f32.partialorder %v2557, 8.507059e+37
  %v2559 = vand.u32 %v2516, 2147483648
  %v2560 = vor.u32 1.1754944e-38, %v2559
  %v2561 = vsel %vm2558, %v2560, %v2556
  %v2562 = vmul.f32 1.0, %v2561
  %v2563 = vrcp.pop %v2517
  %v2564 = vmul.f32 %v2517, %v2563
  %v2565 = vsub.f32 1.0, %v2564
  %v2566 = vmul.f32 %v2563, %v2565
  %v2567 = vadd.f32 %v2563, %v2566
  %vm2568 = vweird.f32 %v2517
  %vm2569 = vweird.f32 %v2563
  %vm2570 = vmor %vm2568, %vm2569
  %v2571 = vsel %vm2570, %v2563, %v2567
  %v2572 = vand.u32 2147483647, %v2517
  %vm2573 = vcmp.eq.f32.partialorder %v2572, 8.507059e+37
  %v2574 = vand.u32 %v2517, 2147483648
  %v2575 = vor.u32 1.1754944e-38, %v2574
  %v2576 = vsel %vm2573, %v2575, %v2571
  %v2577 = vmul.f32 1.0, %v2576
  %v2578 = vadd.f32 %v2407, %v51
  %v2579 = vadd.f32 %v2410, %v56
  %v2580 = vadd.f32 %v2413, %v61
  %v2581 = vadd.f32 %v2416, %v66
  %v2582 = vmul.f32 %v2452, %v2578
  %v2583 = vmul.f32 %v2467, %v2579
  %v2584 = vmul.f32 %v2482, %v2580
  %v2585 = vmul.f32 %v2497, %v2581
  %v2586 = vadd.f32 %v2354, %v2582
  %v2587 = vadd.f32 %v2357, %v2583
  %v2588 = vadd.f32 %v2360, %v2584
  %v2589 = vadd.f32 %v2363, %v2585
  %v2590 = vtanh.pop %v2586
  %v2591 = vtanh.pop %v2587
  %v2592 = vtanh.pop %v2588
  %v2593 = vtanh.pop %v2589
  %v2594 = vsub.f32 %v2294, %v2590
  %v2595 = vsub.f32 %v2295, %v2591
  %v2596 = vsub.f32 %v2296, %v2592
  %v2597 = vsub.f32 %v2297, %v2593
  %v2598 = vmul.f32 %v2532, %v2594
  %v2599 = vmul.f32 %v2547, %v2595
  %v2600 = vmul.f32 %v2562, %v2596
  %v2601 = vmul.f32 %v2577, %v2597
  %v2602 = vadd.f32 %v2590, %v2598
  %v2603 = vadd.f32 %v2591, %v2599
  %v2604 = vadd.f32 %v2592, %v2600
  %v2605 = vadd.f32 %v2593, %v2601
  %s2606 = scalar_lea.vmem %s5, 224
  %2607 = vst [vmem:[%s2606] sm:$0xff] %v2602
  %2608 = vst [vmem:[%s2606 + $0x8] sm:$0xff] %v2603
  %2609 = vst [vmem:[%s2606 + $0x10] sm:$0xff] %v2604
  %2610 = vst [vmem:[%s2606 + $0x18] sm:$0xff] %v2605
  // Predicated region
  $region22: #{encoder_rnn_forward.1} parent=0 // pred_check
    _
  $region23: #{encoder_rnn_forward.1} parent=0 // pred_check_branch
    %2612 = sbr.rel (0) target = $region25
  $region24: #{encoder_rnn_forward.1} parent=0 // pred_region
    _
  $region25: #{encoder_rnn_forward.1} parent=0 // pred_fallthru
    _
  // Predicated region
  $region26: #{encoder_rnn_forward.1} parent=0 // pred_check
    _
  $region27: #{encoder_rnn_forward.1} parent=0 // pred_check_branch
    %2614 = sbr.rel (0) target = $region29
  $region28: #{encoder_rnn_forward.1} parent=0 // pred_region
    _
  $region29: #{encoder_rnn_forward.1} parent=0 // pred_fallthru
    _

</llo_original>
